<compile_context>
chip_gen: v5e
topology: v5e:2x2
jax: 0.10.0
libtpu: 0.0.40
codegen_flags: <defaults>
</compile_context>

<pallas_src>
import functools

import numpy as np
import jax
import jax.numpy as jnp
from jax.experimental import pallas as pl
from jax.experimental.pallas import tpu as pltpu

LANE = 128


def _round_up(x, m):
    return (x + m - 1) // m * m


def _pad_last(x, target):
    c = x.shape[-1]
    if c == target:
        return x
    pad = [(0, 0)] * (x.ndim - 1) + [(0, target - c)]
    return jnp.pad(x, pad)


def _compiler_params():
    return pltpu.CompilerParams(dimension_semantics=("parallel",))


# ----------------------------------------------------------------------------
# Pallas kernels
# ----------------------------------------------------------------------------
def _conv3x3_kernel(x_ref, w_ref, b_ref, *rest, taps, th, wo8, h_tile, relu, has_res):
    """3x3 conv on one row tile of one image (stride folded into the taps).

    x_ref: (1, n_phase*h_tile, Wp_t, Cin) bf16 -- phase planes stacked along rows.
    w_ref: (9*Cin, Cout) bf16 with BN scale pre-folded.
    b_ref: (1, Cout) f32 folded-BN bias.
    taps : 9 static (phase, row_off, col_off) tuples (k-th tap matches rows
           [k*Cin:(k+1)*Cin] of w_ref).
    Output: flattened (1, th*wo8, Cout) bf16 row tile.
    """
    if has_res:
        res_ref, o_ref = rest
    else:
        (o_ref,) = rest
    cin = x_ref.shape[-1]
    cout = o_ref.shape[-1]
    m = th * wo8

    # Extract each distinct column shift once (<=3 shifted bf16 planes per tile)
    # so the per-tap slice+reshape is aligned and copy-free.
    w_offsets = sorted({ow for (_, _, ow) in taps})
    planes = {ow: x_ref[0, :, ow:ow + wo8, :] for ow in w_offsets}

    acc = jnp.zeros((m, cout), jnp.float32)
    for k, (p, oh, ow) in enumerate(taps):
        base = p * h_tile + oh
        patch = planes[ow][base:base + th].reshape(m, cin)      # bf16, no f32 upcast
        wk = w_ref[k * cin:(k + 1) * cin, :]                    # (Cin, Cout) bf16
        acc = acc + jnp.dot(patch, wk, preferred_element_type=jnp.float32)
    acc = acc + b_ref[...].astype(jnp.float32)
    if has_res:
        acc = acc + res_ref[0].astype(jnp.float32)
    if relu:
        acc = jnp.maximum(acc, 0.0)
    o_ref[0] = acc.astype(o_ref.dtype)


def _matmul_bias_kernel(x_ref, w_ref, b_ref, *rest, relu, has_res):
    """(tm, K)@(K, N) bf16 MXU matmul + bias [+ residual] [+ ReLU] (1x1 convs)."""
    if has_res:
        res_ref, o_ref = rest
    else:
        (o_ref,) = rest
    acc = jnp.dot(x_ref[...], w_ref[...], preferred_element_type=jnp.float32)
    acc = acc + b_ref[...].astype(jnp.float32)
    if has_res:
        acc = acc + res_ref[...].astype(jnp.float32)
    if relu:
        acc = jnp.maximum(acc, 0.0)
    o_ref[...] = acc.astype(o_ref.dtype)


def _upsample_kernel(x_ref, o_ref, *, h_taps, w_taps):
    """Bilinear align_corners=True upsample of one image (Hi,Wi,C)->(Ho,Wo,C).

    h_taps / w_taps are compile-time (lo, w0, w1) Python tuples: each output
    row/column is a weighted sum of at most 2 input rows/columns (no captured
    array constants, no dense interpolation loops).
    """
    x = x_ref[0]                                              # (Hi, Wi, C) bf16
    rows = []
    for (lo, w0, w1) in h_taps:
        r = x[lo].astype(jnp.float32) * w0
        if w1 != 0.0:
            r = r + x[lo + 1].astype(jnp.float32) * w1
        rows.append(r)
    xh = jnp.stack(rows, axis=0)                              # (Ho, Wi, C) f32
    for wo, (lo, w0, w1) in enumerate(w_taps):
        c = xh[:, lo, :] * w0
        if w1 != 0.0:
            c = c + xh[:, lo + 1, :] * w1
        o_ref[0, :, wo, :] = c.astype(o_ref.dtype)


def _sum_relu_kernel(*refs, n_terms):
    in_refs = refs[:n_terms]
    o_ref = refs[n_terms]
    acc = in_refs[0][...].astype(jnp.float32)
    for r in in_refs[1:]:
        acc = acc + r[...].astype(jnp.float32)
    o_ref[...] = jnp.maximum(acc, 0.0).astype(o_ref.dtype)


# ----------------------------------------------------------------------------
# Pallas wrappers
# ----------------------------------------------------------------------------
def _choose_row_tile(Ho, wp_t, wo8, cp, cpo, n_phase, has_res):
    # bf16 input rows + bf16 out + optional bf16 residual + f32 acc, per output row.
    per_row = n_phase * wp_t * cp * 2 + wo8 * cpo * (2 + 4 + (2 if has_res else 0))
    budget = 4 * 1024 * 1024  # conservative: fits v5e's 16 MiB scoped VMEM w/ dbl-buffering
    return max(1, min(Ho, budget // per_row))


def conv3x3(x, wmat, bias, *, stride=1, relu=False, residual=None):
    """x: (N,H,W,Cp) bf16 channel-padded.  wmat: (9*Cp, Cpo) bf16 (BN scale folded).
    bias: (Cpo,) f32.  residual: (N,H,W,Cpo) bf16, only with stride=1."""
    assert stride in (1, 2)
    assert residual is None or stride == 1, "residual add requires stride=1"
    N, H, W, Cp = x.shape
    Cpo = wmat.shape[1]
    Ho = (H - 1) // stride + 1
    Wo = (W - 1) // stride + 1
    Wo8 = _round_up(Wo, 8)       # extra zero columns keep the flattening sublane-aligned

    if stride == 1:
        n_phase, h_extra = 1, 2
        xp = jnp.pad(x, ((0, 0), (1, 1), (1, 1 + (Wo8 - Wo)), (0, 0)))
        planes = xp[:, None]                                    # (N,1,Ho+2,Wo8+2,Cp)
        taps = tuple((0, dh, dw) for dh in range(3) for dw in range(3))
    else:
        # stride-2 folded into addressing: 4 phase planes xpad[a::2, b::2].
        n_phase, h_extra = 4, 1
        xp = jnp.pad(x, ((0, 0), (1, 2 * Ho + 1 - H), (1, 2 * Wo8 + 1 - W), (0, 0)))
        planes = jnp.stack([xp[:, a::2, b::2, :] for a in (0, 1) for b in (0, 1)],
                           axis=1)                              # (N,4,Ho+1,Wo8+1,Cp)
        taps = tuple(((dh % 2) * 2 + (dw % 2), dh // 2, dw // 2)
                     for dh in range(3) for dw in range(3))

    Wp_t = planes.shape[3]
    has_res = residual is not None
    th = _choose_row_tile(Ho, Wp_t, Wo8, Cp, Cpo, n_phase, has_res)
    n_tiles = pl.cdiv(Ho, th)
    Hopad = n_tiles * th
    if Hopad + h_extra > planes.shape[2]:
        planes = jnp.pad(planes, ((0, 0), (0, 0),
                                  (0, Hopad + h_extra - planes.shape[2]),
                                  (0, 0), (0, 0)))
    h_tile = th + h_extra
    # Row tiles with their 1-2 halo rows duplicated (cheap; replaces the HBM-wide pad
    # of the old version and gives a N*n_tiles grid for pipelining / 2-TC sharding).
    xt = jnp.stack([planes[:, :, t * th:t * th + h_tile] for t in range(n_tiles)],
                   axis=1)
    xt = xt.reshape(N * n_tiles, n_phase * h_tile, Wp_t, Cp)

    args = [xt, wmat, bias.reshape(1, Cpo).astype(jnp.float32)]
    in_specs = [
        pl.BlockSpec((1, n_phase * h_tile, Wp_t, Cp), lambda i: (i, 0, 0, 0)),
        pl.BlockSpec((9 * Cp, Cpo), lambda i: (0, 0)),
        pl.BlockSpec((1, Cpo), lambda i: (0, 0)),
    ]
    if has_res:
        r = residual
        if Wo8 != Wo:
            r = jnp.pad(r, ((0, 0), (0, 0), (0, Wo8 - Wo), (0, 0)))
        if Hopad != Ho:
            r = jnp.pad(r, ((0, 0), (0, Hopad - Ho), (0, 0), (0, 0)))
        args.append(r.reshape(N * n_tiles, th * Wo8, Cpo))
        in_specs.append(pl.BlockSpec((1, th * Wo8, Cpo), lambda i: (i, 0, 0)))

    kernel = functools.partial(_conv3x3_kernel, taps=taps, th=th, wo8=Wo8,
                               h_tile=h_tile, relu=relu, has_res=has_res)
    out = pl.pallas_call(
        kernel,
        out_shape=jax.ShapeDtypeStruct((N * n_tiles, th * Wo8, Cpo), jnp.bfloat16),
        grid=(N * n_tiles,),
        in_specs=in_specs,
        out_specs=pl.BlockSpec((1, th * Wo8, Cpo), lambda i: (i, 0, 0)),
        compiler_params=_compiler_params(),
    )(*args)
    out = out.reshape(N, Hopad, Wo8, Cpo)
    return out[:, :Ho, :Wo, :]


def matmul_bias(x, w, bias, *, relu=False, residual=None, out_dtype=jnp.bfloat16):
    """x:(M,K) bf16, w:(K,N) bf16, bias:(N,) f32; row-tiled, lane-dense output."""
    M, K = x.shape
    N = w.shape[1]
    cap = 1024 if max(K, N) <= 256 else 512     # bigger tiles amortize per-step overhead
    tm = min(cap, _round_up(M, 8))
    Mp = _round_up(M, tm)
    if Mp != M:
        x = jnp.pad(x, ((0, Mp - M), (0, 0)))
        if residual is not None:
            residual = jnp.pad(residual, ((0, Mp - M), (0, 0)))
    args = [x, w, bias.reshape(1, N).astype(jnp.float32)]
    in_specs = [
        pl.BlockSpec((tm, K), lambda i: (i, 0)),
        pl.BlockSpec((K, N), lambda i: (0, 0)),
        pl.BlockSpec((1, N), lambda i: (0, 0)),
    ]
    has_res = residual is not None
    if has_res:
        args.append(residual)
        in_specs.append(pl.BlockSpec((tm, N), lambda i: (i, 0)))
    kernel = functools.partial(_matmul_bias_kernel, relu=relu, has_res=has_res)
    out = pl.pallas_call(
        kernel,
        out_shape=jax.ShapeDtypeStruct((Mp, N), out_dtype),
        grid=(Mp // tm,),
        in_specs=in_specs,
        out_specs=pl.BlockSpec((tm, N), lambda i: (i, 0)),
        compiler_params=_compiler_params(),
    )(*args)
    return out[:M] if Mp != M else out


def conv1x1(x, wmat, bias, *, stride=1, relu=False, residual=None):
    if stride != 1:
        x = x[:, ::stride, ::stride, :]
    N, H, W, Cp = x.shape
    Cpo = wmat.shape[1]
    res2 = None if residual is None else residual.reshape(N * H * W, Cpo)
    out = matmul_bias(x.reshape(N * H * W, Cp), wmat, bias, relu=relu, residual=res2)
    return out.reshape(N, H, W, Cpo)


def _interp_taps(out_size, in_size):
    """Per-output (lo, w0, w1) taps of 1-D bilinear align_corners=True interpolation."""
    assert out_size >= in_size, "fuse layers only upsample (out_size >= in_size)"
    if in_size == 1:
        return tuple((0, 1.0, 0.0) for _ in range(out_size))
    taps = []
    for o in range(out_size):
        src = o * (in_size - 1) / (out_size - 1)
        lo = min(int(np.floor(src)), in_size - 2)
        frac = float(src - lo)
        taps.append((lo, float(1.0 - frac), frac))
    return tuple(taps)


def bilinear_upsample(x, Ho, Wo):
    N, Hi, Wi, Cp = x.shape
    if (Ho, Wo) == (Hi, Wi):
        return x
    # TODO(synk): row-tile the grid for very large Ho (per-image is fine at HRNet fuse sizes).
    kernel = functools.partial(_upsample_kernel,
                               h_taps=_interp_taps(Ho, Hi),
                               w_taps=_interp_taps(Wo, Wi))
    return pl.pallas_call(
        kernel,
        out_shape=jax.ShapeDtypeStruct((N, Ho, Wo, Cp), jnp.bfloat16),
        grid=(N,),
        in_specs=[pl.BlockSpec((1, Hi, Wi, Cp), lambda n: (n, 0, 0, 0))],
        out_specs=pl.BlockSpec((1, Ho, Wo, Cp), lambda n: (n, 0, 0, 0)),
        compiler_params=_compiler_params(),
    )(x)


def sum_relu(terms, out_dtype=jnp.float32):
    """relu(sum(terms)) over same-shaped NHWC channel-padded tensors (1 kernel)."""
    shape = terms[0].shape
    Cp = shape[-1]
    flats = [t.reshape(-1, Cp) for t in terms]
    M = flats[0].shape[0]
    tm = min(1024, _round_up(M, 8))
    Mp = _round_up(M, tm)
    if Mp != M:
        flats = [jnp.pad(t, ((0, Mp - M), (0, 0))) for t in flats]
    n_terms = len(flats)
    kernel = functools.partial(_sum_relu_kernel, n_terms=n_terms)
    out = pl.pallas_call(
        kernel,
        out_shape=jax.ShapeDtypeStruct((Mp, Cp), out_dtype),
        grid=(Mp // tm,),
        in_specs=[pl.BlockSpec((tm, Cp), lambda i: (i, 0)) for _ in range(n_terms)],
        out_specs=pl.BlockSpec((tm, Cp), lambda i: (i, 0)),
        compiler_params=_compiler_params(),
    )(*flats)
    out = out[:M] if Mp != M else out
    return out.reshape(shape)


# ----------------------------------------------------------------------------
# BasicBlock (expansion = 1) and the HighResolutionModule forward
# ----------------------------------------------------------------------------
def basic_block(x, p):
    # TODO(synk): fuse conv1+relu+conv2+residual+relu into a single pallas_call with a
    # VMEM-resident halo intermediate to drop the HBM round-trip of the mid activation.
    residual = x
    out = conv3x3(x, p['w1'], p['b1'], relu=True)
    if 'dw' in p:  # downsample path (1x1 conv + BN), stride 1 here
        residual = conv1x1(x, p['dw'], p['db'], relu=False)
    out = conv3x3(out, p['w2'], p['b2'], relu=True, residual=residual)
    return out


def hr_module_forward(xs_nchw, params, cfg):
    num_branches = cfg['num_branches']
    multi_scale_output = cfg['multi_scale_output']
    out_ch = params['out_channels']

    # NCHW f32 -> NHWC bf16, channel-padded to a multiple of 128 (lane-dense stores).
    xs = []
    for x in xs_nchw:
        x = jnp.transpose(x, (0, 2, 3, 1))
        x = _pad_last(x, _round_up(x.shape[-1], LANE)).astype(jnp.bfloat16)
        xs.append(x)

    def to_nchw(y, c):
        return jnp.transpose(y[..., :c].astype(jnp.float32), (0, 3, 1, 2))

    if num_branches == 1:
        y = xs[0]
        for bp in params['branches'][0]:
            y = basic_block(y, bp)
        return [to_nchw(y, out_ch[0])]

    # branches
    for i in range(num_branches):
        for bp in params['branches'][i]:
            xs[i] = basic_block(xs[i], bp)

    # fuse layers
    n_out = num_branches if multi_scale_output else 1
    outs = []
    for i in range(n_out):
        terms = []
        for j in range(num_branches):
            if j == i:
                terms.append(xs[j])
            elif j > i:
                fp = params['fuse'][i][j]
                t = conv1x1(xs[j], fp['w'], fp['b'], relu=False)
                Ho, Wo = xs[i].shape[1], xs[i].shape[2]
                t = bilinear_upsample(t, Ho, Wo)
                terms.append(t)
            else:  # j < i : chain of stride-2 3x3 convs
                fp = params['fuse'][i][j]
                t = xs[j]
                for cp_ in fp['convs']:
                    t = conv3x3(t, cp_['w'], cp_['b'], stride=2, relu=cp_['relu'])
                terms.append(t)
        y = sum_relu(terms, out_dtype=jnp.float32)   # one fused add+ReLU kernel
        outs.append(to_nchw(y, out_ch[i]))
    return outs


# ----------------------------------------------------------------------------
# Parameter construction: fold BN into scale/bias, fold scale into weights,
# pad channels to 128 and convert to kernel-ready bf16 layout ONCE.
# ----------------------------------------------------------------------------
def _make_bn(key, ch):
    k1, k2, k3, k4 = jax.random.split(key, 4)
    gamma = 1.0 + 0.1 * jax.random.normal(k1, (ch,), jnp.float32)
    beta = 0.1 * jax.random.normal(k2, (ch,), jnp.float32)
    mean = 0.1 * jax.random.normal(k3, (ch,), jnp.float32)
    var = 1.0 + 0.1 * jax.random.uniform(k4, (ch,), jnp.float32)
    eps = 1e-5
    scale = gamma / jnp.sqrt(var + eps)
    bias = beta - mean * scale
    return scale, bias


def _conv_w(key, cout, cin, k):
    return 0.05 * jax.random.normal(key, (cout, cin, k, k), jnp.float32)


def _prep_conv3x3(w, scale, bias):
    cout, cin = w.shape[0], w.shape[1]
    cp, cpo = _round_up(cin, LANE), _round_up(cout, LANE)
    w_eff = w * scale.reshape(cout, 1, 1, 1)                    # fold BN scale
    wt = jnp.transpose(w_eff, (2, 3, 1, 0))                     # (3,3,Cin,Cout)
    wt = jnp.pad(wt, ((0, 0), (0, 0), (0, cp - cin), (0, cpo - cout)))
    wmat = wt.reshape(9 * cp, cpo).astype(jnp.bfloat16)
    b = jnp.pad(bias, (0, cpo - cout)).astype(jnp.float32)
    return wmat, b


def _prep_conv1x1(w, scale, bias):
    cout, cin = w.shape[0], w.shape[1]
    cp, cpo = _round_up(cin, LANE), _round_up(cout, LANE)
    w_eff = (w[:, :, 0, 0] * scale.reshape(cout, 1)).T          # (Cin, Cout)
    w_eff = jnp.pad(w_eff, ((0, cp - cin), (0, cpo - cout))).astype(jnp.bfloat16)
    b = jnp.pad(bias, (0, cpo - cout)).astype(jnp.float32)
    return w_eff, b


def make_params(key, cfg):
    num_branches = cfg['num_branches']
    num_blocks = cfg['num_blocks']
    num_inchannels = list(cfg['num_inchannels'])
    num_channels = cfg['num_channels']
    expansion = 1  # BasicBlock

    params = {'branches': [], 'fuse': {}}

    for bi in range(num_branches):
        blocks = []
        inc = num_inchannels[bi]
        planes = num_channels[bi]
        for _ in range(num_blocks[bi]):
            key, k1, k2, k3, k4, k5, k6 = jax.random.split(key, 7)
            p = {}
            w1 = _conv_w(k1, planes, inc, 3)
            s1, b1 = _make_bn(k2, planes)
            p['w1'], p['b1'] = _prep_conv3x3(w1, s1, b1)
            w2 = _conv_w(k3, planes * expansion, planes, 3)
            s2, b2 = _make_bn(k4, planes * expansion)
            p['w2'], p['b2'] = _prep_conv3x3(w2, s2, b2)
            ref = {'w1': w1, 's1': s1, 'b1': b1, 'w2': w2, 's2': s2, 'b2': b2}
            if inc != planes * expansion:
                dw = _conv_w(k5, planes * expansion, inc, 1)
                ds, db = _make_bn(k6, planes * expansion)
                p['dw'], p['db'] = _prep_conv1x1(dw, ds, db)
                ref.update({'dw': dw, 'ds': ds, 'db': db})
            p['ref'] = ref
            blocks.append(p)
            inc = planes * expansion
        num_inchannels[bi] = inc
        params['branches'].append(blocks)

    if num_branches > 1:
        n_out = num_branches if cfg['multi_scale_output'] else 1
        for i in range(n_out):
            params['fuse'][i] = {}
            for j in range(num_branches):
                if j > i:
                    key, k1, k2 = jax.random.split(key, 3)
                    w = _conv_w(k1, num_inchannels[i], num_inchannels[j], 1)
                    s, b = _make_bn(k2, num_inchannels[i])
                    wk, bk = _prep_conv1x1(w, s, b)
                    params['fuse'][i][j] = {'w': wk, 'b': bk,
                                            'ref': {'w': w, 's': s, 'b': b}}
                elif j < i:
                    convs = []
                    for k in range(i - j):
                        key, k1, k2 = jax.random.split(key, 3)
                        if k == i - j - 1:
                            cout, cin, relu = num_inchannels[i], num_inchannels[j], False
                        else:
                            cout, cin, relu = num_inchannels[j], num_inchannels[j], True
                        w = _conv_w(k1, cout, cin, 3)
                        s, b = _make_bn(k2, cout)
                        wk, bk = _prep_conv3x3(w, s, b)
                        convs.append({'w': wk, 'b': bk, 'relu': relu,
                                      'ref': {'w': w, 's': s, 'b': b}})
                    params['fuse'][i][j] = {'convs': convs}

    params['out_channels'] = list(num_inchannels)
    return params, num_inchannels


# ----------------------------------------------------------------------------
# Pure-JAX f32 reference (PyTorch semantics) for validation.
# ----------------------------------------------------------------------------
def _ref_conv_bn(x, w, scale, bias, *, stride=1):
    k = w.shape[-1]
    pad = (k - 1) // 2
    y = jax.lax.conv_general_dilated(
        x, jnp.transpose(w, (2, 3, 1, 0)),
        window_strides=(stride, stride),
        padding=((pad, pad), (pad, pad)),
        dimension_numbers=('NHWC', 'HWIO', 'NHWC'))
    return y * scale + bias


def _interp_matrix(out_size, in_size):
    A = np.zeros((out_size, in_size), np.float32)
    for o, (lo, w0, w1) in enumerate(_interp_taps(out_size, in_size)):
        A[o, lo] += w0
        if w1 != 0.0:
            A[o, lo + 1] += w1
    return A


def _ref_upsample(x, Ho, Wo):
    N, Hi, Wi, C = x.shape
    if (Ho, Wo) == (Hi, Wi):
        return x
    ah = jnp.asarray(_interp_matrix(Ho, Hi))
    aw = jnp.asarray(_interp_matrix(Wo, Wi))
    y = jnp.einsum('oh,nhwc->nowc', ah, x)
    return jnp.einsum('pw,nowc->nopc', aw, y)


def hr_module_reference(xs_nchw, params, cfg):
    nb = cfg['num_branches']
    xs = [jnp.transpose(x, (0, 2, 3, 1)) for x in xs_nchw]

    def block_ref(x, r):
        out = jnp.maximum(_ref_conv_bn(x, r['w1'], r['s1'], r['b1']), 0.0)
        out = _ref_conv_bn(out, r['w2'], r['s2'], r['b2'])
        res = x
        if 'dw' in r:
            res = _ref_conv_bn(x, r['dw'], r['ds'], r['db'])
        return jnp.maximum(out + res, 0.0)

    for i in range(nb):
        for bp in params['branches'][i]:
            xs[i] = block_ref(xs[i], bp['ref'])
    if nb == 1:
        return [jnp.transpose(xs[0], (0, 3, 1, 2))]
    n_out = nb if cfg['multi_scale_output'] else 1
    outs = []
    for i in range(n_out):
        y = xs[i]
        for j in range(nb):
            if j == i:
                continue
            if j > i:
                fr = params['fuse'][i][j]['ref']
                t = _ref_conv_bn(xs[j], fr['w'], fr['s'], fr['b'])
                t = _ref_upsample(t, xs[i].shape[1], xs[i].shape[2])
            else:
                t = xs[j]
                for cp_ in params['fuse'][i][j]['convs']:
                    fr = cp_['ref']
                    t = _ref_conv_bn(t, fr['w'], fr['s'], fr['b'], stride=2)
                    if cp_['relu']:
                        t = jnp.maximum(t, 0.0)
            y = y + t
        outs.append(jnp.transpose(jnp.maximum(y, 0.0), (0, 3, 1, 2)))
    return outs


# ----------------------------------------------------------------------------
if __name__ == "__main__":
    cfg = {
        'num_branches': 2,
        'num_blocks': [2, 2],
        'num_inchannels': [4, 8],
        'num_channels': [4, 8],
        'multi_scale_output': True,
    }

    key = jax.random.PRNGKey(0)
    key, kp, kx0, kx1 = jax.random.split(key, 4)
    params, _ = make_params(kp, cfg)

    # Input list (NCHW): branch 0 high-res, branch 1 half-res / more channels.
    x0 = jax.random.normal(kx0, (2, 4, 16, 16), jnp.float32)
    x1 = jax.random.normal(kx1, (2, 8, 8, 8), jnp.float32)

    outs = hr_module_forward([x0, x1], params, cfg)
    outs = [jax.block_until_ready(o) for o in outs]
    assert outs[0].shape == (2, 4, 16, 16)
    assert outs[1].shape == (2, 8, 8, 8)

    # Validate against the pure-JAX f32 reference (loose tolerance: bf16 path).
    refs = hr_module_reference([x0, x1], params, cfg)
    refs = [jax.block_until_ready(r) for r in refs]
    for o, r in zip(outs, refs):
        o = np.asarray(o)
        r = np.asarray(r)
        assert np.all(np.isfinite(o))
        err = float(np.max(np.abs(o - r)))
        tol = 2e-2 + 5e-2 * float(np.max(np.abs(r)))
        assert err <= tol, (err, tol)

    print("KERNEL_OK")
</pallas_src>

<mosaic_0001>
module attributes {stable_mosaic.version = 11 : i64} {
  func.func @_conv3x3_kernel(%arg0: i32, %arg1: memref<1x18x18x128xbf16, #tpu.memory_space<vmem>>, %arg2: memref<1152x128xbf16, #tpu.memory_space<vmem>>, %arg3: memref<1x128xf32, #tpu.memory_space<vmem>>, %arg4: memref<1x256x128xbf16, #tpu.memory_space<vmem>>) attributes {dimension_semantics = [#tpu.dimension_semantics<parallel>], iteration_bounds = array<i64: 2>, scalar_prefetch = 0 : i64, scratch_operands = 0 : i64, tpu.core_type = #tpu.core_type<tc>, window_params = [{transform_indices = @transform_0, window_bounds = array<i64: 1, 18, 18, 128>}, {pipeline_mode = #tpu.pipeline_mode<synchronous>, transform_indices = @transform_1, window_bounds = array<i64: 1152, 128>}, {pipeline_mode = #tpu.pipeline_mode<synchronous>, transform_indices = @transform_2, window_bounds = array<i64: 1, 128>}, {transform_indices = @transform_3, window_bounds = array<i64: 1, 256, 128>}]} {
    %c0 = arith.constant 0 : index
    %c0_0 = arith.constant 0 : index
    %c0_1 = arith.constant 0 : index
    %c0_2 = arith.constant 0 : index
    %0 = vector.load %arg1[%c0, %c0_0, %c0_1, %c0_2] : memref<1x18x18x128xbf16, #tpu.memory_space<vmem>>, vector<1x18x16x128xbf16>
    %1 = vector.shape_cast %0 : vector<1x18x16x128xbf16> to vector<18x16x128xbf16>
    %c0_3 = arith.constant 0 : index
    %c0_4 = arith.constant 0 : index
    %c1 = arith.constant 1 : index
    %c0_5 = arith.constant 0 : index
    %2 = vector.load %arg1[%c0_3, %c0_4, %c1, %c0_5] : memref<1x18x18x128xbf16, #tpu.memory_space<vmem>>, vector<1x18x16x128xbf16>
    %3 = vector.shape_cast %2 : vector<1x18x16x128xbf16> to vector<18x16x128xbf16>
    %c0_6 = arith.constant 0 : index
    %c0_7 = arith.constant 0 : index
    %c2 = arith.constant 2 : index
    %c0_8 = arith.constant 0 : index
    %4 = vector.load %arg1[%c0_6, %c0_7, %c2, %c0_8] : memref<1x18x18x128xbf16, #tpu.memory_space<vmem>>, vector<1x18x16x128xbf16>
    %5 = vector.shape_cast %4 : vector<1x18x16x128xbf16> to vector<18x16x128xbf16>
    %cst = arith.constant 0.000000e+00 : f32
    %6 = vector.broadcast %cst : f32 to vector<256x128xf32>
    %7 = vector.extract_strided_slice %1 {offsets = [0, 0, 0], sizes = [16, 16, 128], strides = [1, 1, 1]} : vector<18x16x128xbf16> to vector<16x16x128xbf16>
    %8 = vector.shape_cast %7 : vector<16x16x128xbf16> to vector<256x128xbf16>
    %c0_9 = arith.constant 0 : index
    %c0_10 = arith.constant 0 : index
    %9 = vector.load %arg2[%c0_9, %c0_10] : memref<1152x128xbf16, #tpu.memory_space<vmem>>, vector<128x128xbf16>
    %cst_11 = arith.constant dense<0.000000e+00> : vector<256x128xf32>
    %10 = tpu.matmul %8, %9, %cst_11 {dimension_numbers = #tpu.dot_dimension_numbers<[1], [0], [0], [1], [0, 0, 1, 1], [], []>} : vector<256x128xbf16>, vector<128x128xbf16>, vector<256x128xf32> -> vector<256x128xf32>
    %11 = arith.addf %6, %10 : vector<256x128xf32>
    %12 = vector.extract_strided_slice %3 {offsets = [0, 0, 0], sizes = [16, 16, 128], strides = [1, 1, 1]} : vector<18x16x128xbf16> to vector<16x16x128xbf16>
    %13 = vector.shape_cast %12 : vector<16x16x128xbf16> to vector<256x128xbf16>
    %c128 = arith.constant 128 : index
    %c0_12 = arith.constant 0 : index
    %14 = vector.load %arg2[%c128, %c0_12] : memref<1152x128xbf16, #tpu.memory_space<vmem>>, vector<128x128xbf16>
    %cst_13 = arith.constant dense<0.000000e+00> : vector<256x128xf32>
    %15 = tpu.matmul %13, %14, %cst_13 {dimension_numbers = #tpu.dot_dimension_numbers<[1], [0], [0], [1], [0, 0, 1, 1], [], []>} : vector<256x128xbf16>, vector<128x128xbf16>, vector<256x128xf32> -> vector<256x128xf32>
    %16 = arith.addf %11, %15 : vector<256x128xf32>
    %17 = vector.extract_strided_slice %5 {offsets = [0, 0, 0], sizes = [16, 16, 128], strides = [1, 1, 1]} : vector<18x16x128xbf16> to vector<16x16x128xbf16>
    %18 = vector.shape_cast %17 : vector<16x16x128xbf16> to vector<256x128xbf16>
    %c256 = arith.constant 256 : index
    %c0_14 = arith.constant 0 : index
    %19 = vector.load %arg2[%c256, %c0_14] : memref<1152x128xbf16, #tpu.memory_space<vmem>>, vector<128x128xbf16>
    %cst_15 = arith.constant dense<0.000000e+00> : vector<256x128xf32>
    %20 = tpu.matmul %18, %19, %cst_15 {dimension_numbers = #tpu.dot_dimension_numbers<[1], [0], [0], [1], [0, 0, 1, 1], [], []>} : vector<256x128xbf16>, vector<128x128xbf16>, vector<256x128xf32> -> vector<256x128xf32>
    %21 = arith.addf %16, %20 : vector<256x128xf32>
    %22 = vector.extract_strided_slice %1 {offsets = [1, 0, 0], sizes = [16, 16, 128], strides = [1, 1, 1]} : vector<18x16x128xbf16> to vector<16x16x128xbf16>
    %23 = vector.shape_cast %22 : vector<16x16x128xbf16> to vector<256x128xbf16>
    %c384 = arith.constant 384 : index
    %c0_16 = arith.constant 0 : index
    %24 = vector.load %arg2[%c384, %c0_16] : memref<1152x128xbf16, #tpu.memory_space<vmem>>, vector<128x128xbf16>
    %cst_17 = arith.constant dense<0.000000e+00> : vector<256x128xf32>
    %25 = tpu.matmul %23, %24, %cst_17 {dimension_numbers = #tpu.dot_dimension_numbers<[1], [0], [0], [1], [0, 0, 1, 1], [], []>} : vector<256x128xbf16>, vector<128x128xbf16>, vector<256x128xf32> -> vector<256x128xf32>
    %26 = arith.addf %21, %25 : vector<256x128xf32>
    %27 = vector.extract_strided_slice %3 {offsets = [1, 0, 0], sizes = [16, 16, 128], strides = [1, 1, 1]} : vector<18x16x128xbf16> to vector<16x16x128xbf16>
    %28 = vector.shape_cast %27 : vector<16x16x128xbf16> to vector<256x128xbf16>
    %c512 = arith.constant 512 : index
    %c0_18 = arith.constant 0 : index
    %29 = vector.load %arg2[%c512, %c0_18] : memref<1152x128xbf16, #tpu.memory_space<vmem>>, vector<128x128xbf16>
    %cst_19 = arith.constant dense<0.000000e+00> : vector<256x128xf32>
    %30 = tpu.matmul %28, %29, %cst_19 {dimension_numbers = #tpu.dot_dimension_numbers<[1], [0], [0], [1], [0, 0, 1, 1], [], []>} : vector<256x128xbf16>, vector<128x128xbf16>, vector<256x128xf32> -> vector<256x128xf32>
    %31 = arith.addf %26, %30 : vector<256x128xf32>
    %32 = vector.extract_strided_slice %5 {offsets = [1, 0, 0], sizes = [16, 16, 128], strides = [1, 1, 1]} : vector<18x16x128xbf16> to vector<16x16x128xbf16>
    %33 = vector.shape_cast %32 : vector<16x16x128xbf16> to vector<256x128xbf16>
    %c640 = arith.constant 640 : index
    %c0_20 = arith.constant 0 : index
    %34 = vector.load %arg2[%c640, %c0_20] : memref<1152x128xbf16, #tpu.memory_space<vmem>>, vector<128x128xbf16>
    %cst_21 = arith.constant dense<0.000000e+00> : vector<256x128xf32>
    %35 = tpu.matmul %33, %34, %cst_21 {dimension_numbers = #tpu.dot_dimension_numbers<[1], [0], [0], [1], [0, 0, 1, 1], [], []>} : vector<256x128xbf16>, vector<128x128xbf16>, vector<256x128xf32> -> vector<256x128xf32>
    %36 = arith.addf %31, %35 : vector<256x128xf32>
    %37 = vector.extract_strided_slice %1 {offsets = [2, 0, 0], sizes = [16, 16, 128], strides = [1, 1, 1]} : vector<18x16x128xbf16> to vector<16x16x128xbf16>
    %38 = vector.shape_cast %37 : vector<16x16x128xbf16> to vector<256x128xbf16>
    %c768 = arith.constant 768 : index
    %c0_22 = arith.constant 0 : index
    %39 = vector.load %arg2[%c768, %c0_22] : memref<1152x128xbf16, #tpu.memory_space<vmem>>, vector<128x128xbf16>
    %cst_23 = arith.constant dense<0.000000e+00> : vector<256x128xf32>
    %40 = tpu.matmul %38, %39, %cst_23 {dimension_numbers = #tpu.dot_dimension_numbers<[1], [0], [0], [1], [0, 0, 1, 1], [], []>} : vector<256x128xbf16>, vector<128x128xbf16>, vector<256x128xf32> -> vector<256x128xf32>
    %41 = arith.addf %36, %40 : vector<256x128xf32>
    %42 = vector.extract_strided_slice %3 {offsets = [2, 0, 0], sizes = [16, 16, 128], strides = [1, 1, 1]} : vector<18x16x128xbf16> to vector<16x16x128xbf16>
    %43 = vector.shape_cast %42 : vector<16x16x128xbf16> to vector<256x128xbf16>
    %c896 = arith.constant 896 : index
    %c0_24 = arith.constant 0 : index
    %44 = vector.load %arg2[%c896, %c0_24] : memref<1152x128xbf16, #tpu.memory_space<vmem>>, vector<128x128xbf16>
    %cst_25 = arith.constant dense<0.000000e+00> : vector<256x128xf32>
    %45 = tpu.matmul %43, %44, %cst_25 {dimension_numbers = #tpu.dot_dimension_numbers<[1], [0], [0], [1], [0, 0, 1, 1], [], []>} : vector<256x128xbf16>, vector<128x128xbf16>, vector<256x128xf32> -> vector<256x128xf32>
    %46 = arith.addf %41, %45 : vector<256x128xf32>
    %47 = vector.extract_strided_slice %5 {offsets = [2, 0, 0], sizes = [16, 16, 128], strides = [1, 1, 1]} : vector<18x16x128xbf16> to vector<16x16x128xbf16>
    %48 = vector.shape_cast %47 : vector<16x16x128xbf16> to vector<256x128xbf16>
    %c1024 = arith.constant 1024 : index
    %c0_26 = arith.constant 0 : index
    %49 = vector.load %arg2[%c1024, %c0_26] : memref<1152x128xbf16, #tpu.memory_space<vmem>>, vector<128x128xbf16>
    %cst_27 = arith.constant dense<0.000000e+00> : vector<256x128xf32>
    %50 = tpu.matmul %48, %49, %cst_27 {dimension_numbers = #tpu.dot_dimension_numbers<[1], [0], [0], [1], [0, 0, 1, 1], [], []>} : vector<256x128xbf16>, vector<128x128xbf16>, vector<256x128xf32> -> vector<256x128xf32>
    %51 = arith.addf %46, %50 : vector<256x128xf32>
    %c0_28 = arith.constant 0 : index
    %c0_29 = arith.constant 0 : index
    %52 = vector.load %arg3[%c0_28, %c0_29] : memref<1x128xf32, #tpu.memory_space<vmem>>, vector<1x128xf32>
    %53 = vector.broadcast %52 : vector<1x128xf32> to vector<256x128xf32>
    %54 = arith.addf %51, %53 : vector<256x128xf32>
    %cst_30 = arith.constant 0.000000e+00 : f32
    %55 = vector.broadcast %cst_30 : f32 to vector<256x128xf32>
    %56 = arith.maximumf %54, %55 : vector<256x128xf32>
    %57 = arith.truncf %56 : vector<256x128xf32> to vector<256x128xbf16>
    %c0_31 = arith.constant 0 : index
    %c0_32 = arith.constant 0 : index
    %c0_33 = arith.constant 0 : index
    %58 = vector.load %arg4[%c0_31, %c0_32, %c0_33] : memref<1x256x128xbf16, #tpu.memory_space<vmem>>, vector<1x256x128xbf16>
    %59 = vector.shape_cast %58 : vector<1x256x128xbf16> to vector<256x128xbf16>
    %60 = vector.shape_cast %57 : vector<256x128xbf16> to vector<1x256x128xbf16>
    tpu.vector_store %arg4[%c0_31, %c0_32, %c0_33], %60 {strides = array<i32>} : memref<1x256x128xbf16, #tpu.memory_space<vmem>>, vector<1x256x128xbf16>,
    return
  }
  func.func @transform_0(%arg0: i32) -> (i32, i32, i32, i32) {
    %c0_i32 = arith.constant 0 : i32
    %c0_i32_0 = arith.constant 0 : i32
    %c0_i32_1 = arith.constant 0 : i32
    %c0_i32_2 = arith.constant 0 : i32
    return %arg0, %c0_i32, %c0_i32_0, %c0_i32_1 : i32, i32, i32, i32
  }
  func.func @transform_1(%arg0: i32) -> (i32, i32) {
    %c0_i32 = arith.constant 0 : i32
    %c0_i32_0 = arith.constant 0 : i32
    %c0_i32_1 = arith.constant 0 : i32
    return %c0_i32, %c0_i32_0 : i32, i32
  }
  func.func @transform_2(%arg0: i32) -> (i32, i32) {
    %c0_i32 = arith.constant 0 : i32
    %c0_i32_0 = arith.constant 0 : i32
    %c0_i32_1 = arith.constant 0 : i32
    return %c0_i32, %c0_i32_0 : i32, i32
  }
  func.func @transform_3(%arg0: i32) -> (i32, i32, i32) {
    %c0_i32 = arith.constant 0 : i32
    %c0_i32_0 = arith.constant 0 : i32
    %c0_i32_1 = arith.constant 0 : i32
    return %arg0, %c0_i32, %c0_i32_0 : i32, i32, i32
  }
}

</mosaic_0001>

<llo_original>
// kernel: tpu_custom_call.1
$region0: #{tpu_custom_call.1}
  #allocation0 [shape = 'u32[]', space=smem, size = 0x4, offset = 0x4, fixed_abs, tag = 'smem constant byte address 0x4 - core index']
  #allocation1 [shape = 'u32[72,128]{1,0:T(1,128)}', space=vmem, size = 0x9000, scoped, tag = 'internal scratch']
  %s0 = inlined_call_operand.vmem [shape: bf16[2,18,18,128], index: 0, kind: input, shape index: {}]
  %s1 = inlined_call_operand.vmem [shape: bf16[1152,128], index: 1, kind: input, shape index: {}]
  %s2 = inlined_call_operand.vmem [shape: f32[1,128], index: 2, kind: input, shape index: {}]
  %s3 = inlined_call_operand.hbm [shape: bf16[2,256,128], index: 3, kind: output, shape index: {}]
  %s4 = sld [smem:[#allocation0]]
  $region45: #{tpu_custom_call.1} parent=0
    _
  %s6 = ssub.s32 1, %s4
  %s7 = scalar_select 0, %s6, %s4
  $region1: #{tpu_custom_call.1} parent=0
    #allocation2 [shape = 'u8[131072]{0}', space=vmem, size = 0x20000, scoped, tag = 'output window, operand 0']
    #allocation3 [shape = 's32[2]{0}', space=sflag, size = 0x8, scoped, tag = 'scoped memory for tpu_custom_call.1']
    %8 = vsyncpa [#allocation3], 0
    %s9 = scalar_lea.sflag [#allocation3], 1
    %10 = vsyncpa %s9, 0
    loop: start=0, step=1, limit=4
    $region2: #{tpu_custom_call.1} parent=1 // loop_pre_header
      _
    $region3: #{tpu_custom_call.1} parent=1 // loop_header
      %s12 = sphi 0, %s16
      %p13 = scmp.ge.s32.totalorder %s12, 4
      %s22 = sphi 0, %s24
      %s25 = sphi 0, %s22
      %s26 = sphi 0, %s25
      %s42 = sphi 0, %s26
      %s46 = sphi 0, %s46
      %s48 = sphi 0, %s46
      %s49 = sphi 0, %s48
      %s63 = sphi 0, %s49
      %s67 = sphi 0, %s67
      %s69 = sphi 0, %s67
      %s70 = sphi 0, %s69
      %s84 = sphi 0, %s70
      %s90 = sphi 0, %s92
      %s93 = sphi 0, %s90
      %s94 = sphi 0, %s93
      %s110 = sphi 0, %s94
    $region4: #{tpu_custom_call.1} parent=1 // loop_header_branch
      %15 = sbr.rel (%p13) target = $region8
    $region5: #{tpu_custom_call.1} parent=1 // loop_body
      %s17 = ssub.s32 %s12, 1
      %s18 = ssub.s32 %s12, 2
      %s19 = sadd.s32 %s12, 1
      %s20 = ssub.s32 %s12, %s19
      %p21 = scmp.eq.s32.totalorder %s20, 0
      %s23 = sadd.s32 %s22, 1
      %s24 = scalar_select %p21, %s22, %s23
      %p27 = pneg %p21
      %p28 = scmp.eq.s32.totalorder %s12, 1
      %p29 = por %p27, %p28
      %p30 = scmp.ne.s32.totalorder %s22, %s25
      %p31 = scmp.eq.s32.totalorder %s12, 0
      %p32 = por %p30, %p31
      %p33 = scmp.ne.s32.totalorder %s22, %s25
      %p34 = scmp.eq.s32.totalorder %s17, 1
      %p35 = por %p33, %p34
      %p36 = scmp.ne.s32.totalorder %s25, %s26
      %p37 = scmp.eq.s32.totalorder %s17, 0
      %p38 = por %p36, %p37
      %p39 = scmp.ne.s32.totalorder %s25, %s26
      %p40 = scmp.eq.s32.totalorder %s18, 1
      %p41 = por %p39, %p40
      %p43 = scmp.ne.s32.totalorder %s26, %s42
      %p44 = scmp.eq.s32.totalorder %s18, 0
      %p45 = por %p43, %p44
      %s47 = sadd.s32 %s46, 1
      %p50 = scmp.eq.s32.totalorder %s12, 1
      %p51 = scmp.ne.s32.totalorder %s46, %s48
      %p52 = scmp.eq.s32.totalorder %s12, 0
      %p53 = por %p51, %p52
      %p54 = scmp.ne.s32.totalorder %s46, %s48
      %p55 = scmp.eq.s32.totalorder %s17, 1
      %p56 = por %p54, %p55
      %p57 = scmp.ne.s32.totalorder %s48, %s49
      %p58 = scmp.eq.s32.totalorder %s17, 0
      %p59 = por %p57, %p58
      %p60 = scmp.ne.s32.totalorder %s48, %s49
      %p61 = scmp.eq.s32.totalorder %s18, 1
      %p62 = por %p60, %p61
      %p64 = scmp.ne.s32.totalorder %s49, %s63
      %p65 = scmp.eq.s32.totalorder %s18, 0
      %p66 = por %p64, %p65
      %s68 = sadd.s32 %s67, 1
      %p71 = scmp.eq.s32.totalorder %s12, 1
      %p72 = scmp.ne.s32.totalorder %s67, %s69
      %p73 = scmp.eq.s32.totalorder %s12, 0
      %p74 = por %p72, %p73
      %p75 = scmp.ne.s32.totalorder %s67, %s69
      %p76 = scmp.eq.s32.totalorder %s17, 1
      %p77 = por %p75, %p76
      %p78 = scmp.ne.s32.totalorder %s69, %s70
      %p79 = scmp.eq.s32.totalorder %s17, 0
      %p80 = por %p78, %p79
      %p81 = scmp.ne.s32.totalorder %s69, %s70
      %p82 = scmp.eq.s32.totalorder %s18, 1
      %p83 = por %p81, %p82
      %p85 = scmp.ne.s32.totalorder %s70, %s84
      %p86 = scmp.eq.s32.totalorder %s18, 0
      %p87 = por %p85, %p86
      %s88 = ssub.s32 %s12, %s19
      %p89 = scmp.eq.s32.totalorder %s88, 0
      %s91 = sadd.s32 %s90, 1
      %s92 = scalar_select %p89, %s90, %s91
      %p95 = pneg %p89
      %p96 = scmp.eq.s32.totalorder %s12, 1
      %p97 = por %p95, %p96
      %p98 = scmp.ne.s32.totalorder %s90, %s93
      %p99 = scmp.eq.s32.totalorder %s12, 0
      %p100 = por %p98, %p99
      %p101 = scmp.ne.s32.totalorder %s90, %s93
      %p102 = scmp.eq.s32.totalorder %s17, 1
      %p103 = por %p101, %p102
      %p104 = scmp.ne.s32.totalorder %s93, %s94
      %p105 = scmp.eq.s32.totalorder %s17, 0
      %p106 = por %p104, %p105
      %p107 = scmp.ne.s32.totalorder %s93, %s94
      %p108 = scmp.eq.s32.totalorder %s18, 1
      %p109 = por %p107, %p108
      %p111 = scmp.ne.s32.totalorder %s94, %s110
      %p112 = scmp.eq.s32.totalorder %s18, 0
      %p113 = por %p111, %p112
      %p114 = scmp.le.s32.totalorder 1, %s12
      %p115 = scmp.lt.s32.totalorder %s12, 3
      %p116 = pnand %p114, %p115
      %p117 = pneg %p116
      // Predicated region
      $region9: #{tpu_custom_call.1} parent=5 // pred_check
        _
      $region10: #{tpu_custom_call.1} parent=5 // pred_check_branch
        %119 = sbr.rel (%p116) target = $region12
      $region11: #{tpu_custom_call.1} parent=5 // pred_region
        %s120 = ssub.s32 %s12, 1
        // Predicated region
        $region13: #{tpu_custom_call.1} parent=11 // pred_check
          %p121 = pneg %p59
        $region14: #{tpu_custom_call.1} parent=11 // pred_check_branch
          %123 = sbr.rel (%p121) target = $region16
        $region15: #{tpu_custom_call.1} parent=11 // pred_region
          _
        $region16: #{tpu_custom_call.1} parent=11 // pred_fallthru
          _
        // Predicated region
        $region17: #{tpu_custom_call.1} parent=11 // pred_check
          %p124 = pneg %p80
        $region18: #{tpu_custom_call.1} parent=11 // pred_check_branch
          %126 = sbr.rel (%p124) target = $region20
        $region19: #{tpu_custom_call.1} parent=11 // pred_region
          _
        $region20: #{tpu_custom_call.1} parent=11 // pred_fallthru
          _
      $region12: #{tpu_custom_call.1} parent=5 // pred_fallthru
        _
      %p127 = scmp.lt.s32.totalorder %s12, 2
      // Predicated region
      $region21: #{tpu_custom_call.1} parent=5 // pred_check
        %p128 = pneg %p127
      $region22: #{tpu_custom_call.1} parent=5 // pred_check_branch
        %130 = sbr.rel (%p128) target = $region24
      $region23: #{tpu_custom_call.1} parent=5 // pred_region
        // Predicated region
        $region25: #{tpu_custom_call.1} parent=23 // pred_check
          %p131 = pneg %p32
        $region26: #{tpu_custom_call.1} parent=23 // pred_check_branch
          %133 = sbr.rel (%p131) target = $region28
        $region27: #{tpu_custom_call.1} parent=23 // pred_region
          %p134 = scmp.lt.s32.totalorder %s12, 1
          %s135 = scalar_select %p134, %s12, 1
          %s136 = smul.addr %s135, 54
          %s137 = smul.addr %s136, 4
          %s138 = scalar_lea.vmem %s0, %s137
        $region28: #{tpu_custom_call.1} parent=23 // pred_fallthru
          _
      $region24: #{tpu_custom_call.1} parent=5 // pred_fallthru
        _
      %p139 = scmp.le.s32.totalorder 1, %s12
      %p140 = scmp.lt.s32.totalorder %s12, 3
      %p141 = pnand %p139, %p140
      %p142 = pneg %p141
      // Predicated region
      $region29: #{tpu_custom_call.1} parent=5 // pred_check
        _
      $region30: #{tpu_custom_call.1} parent=5 // pred_check_branch
        %144 = sbr.rel (%p141) target = $region32
      $region31: #{tpu_custom_call.1} parent=5 // pred_region
        %s145 = ssub.s32 %s12, 1
        %p146 = scmp.lt.s32.totalorder %s17, 1
        %s147 = scalar_select %p146, %s17, 1
        %s148 = smul.addr %s147, 54
        %s149 = smul.addr %s148, 4
        %s150 = scalar_lea.vmem %s0, %s149
        %p151 = pneg %p38
        %p152 = pneg %p35
        %p153 = pneg %p59
        %p154 = pneg %p56
        %p155 = pneg %p80
        %p156 = pneg %p77
        %p157 = pneg %p106
        %p158 = pneg %p103
        %s159 = sand.u32 %s93, 1
        %s160 = scalar_lea.sflag [#allocation3], %s159
        %s161 = sand.u32 %s93, 1
        %s162 = smul.addr %s161, 128
        %s163 = scalar_lea.vmem [#allocation2], %s162
        %p164 = scmp.lt.s32.totalorder %s17, 1
        %s165 = scalar_select %p164, %s17, 1
        %s166 = smul.addr %s165, 54
        %s167 = smul.addr %s166, 4
        %s168 = scalar_lea.vmem %s0, %s167
        %v169 = vld [vmem:[%s168] sm:$0xf]
        %v170 = vld [vmem:[%s168 + $0x4] sm:$0xf]
        %v171 = vld [vmem:[%s168 + $0xc] sm:$0xf]
        %v172 = vld [vmem:[%s168 + $0x10] sm:$0xf]
        %v173 = vld [vmem:[%s168 + $0x18] sm:$0xf]
        %v174 = vld [vmem:[%s168 + $0x1c] sm:$0xf]
        %v175 = vld [vmem:[%s168 + $0x24] sm:$0xf]
        %v176 = vld [vmem:[%s168 + $0x28] sm:$0xf]
        %v177 = vld [vmem:[%s168 + $0x30] sm:$0xf]
        %v178 = vld [vmem:[%s168 + $0x34] sm:$0xf]
        %v179 = vld [vmem:[%s168 + $0x3c] sm:$0xf]
        %v180 = vld [vmem:[%s168 + $0x40] sm:$0xf]
        %v181 = vld [vmem:[%s168 + $0x48] sm:$0xf]
        %v182 = vld [vmem:[%s168 + $0x4c] sm:$0xf]
        %v183 = vld [vmem:[%s168 + $0x54] sm:$0xf]
        %v184 = vld [vmem:[%s168 + $0x58] sm:$0xf]
        %v185 = vld [vmem:[%s168 + $0x60] sm:$0xf]
        %v186 = vld [vmem:[%s168 + $0x64] sm:$0xf]
        %v187 = vld [vmem:[%s168 + $0x6c] sm:$0xf]
        %v188 = vld [vmem:[%s168 + $0x70] sm:$0xf]
        %v189 = vld [vmem:[%s168 + $0x78] sm:$0xf]
        %v190 = vld [vmem:[%s168 + $0x7c] sm:$0xf]
        %v191 = vld [vmem:[%s168 + $0x84] sm:$0xf]
        %v192 = vld [vmem:[%s168 + $0x88] sm:$0xf]
        %v193 = vld [vmem:[%s168 + $0x90] sm:$0xf]
        %v194 = vld [vmem:[%s168 + $0x94] sm:$0xf]
        %v195 = vld [vmem:[%s168 + $0x9c] sm:$0xf]
        %v196 = vld [vmem:[%s168 + $0xa0] sm:$0xf]
        %v197 = vld [vmem:[%s168 + $0xa8] sm:$0xf]
        %v198 = vld [vmem:[%s168 + $0xac] sm:$0xf]
        %v199 = vld [vmem:[%s168 + $0xb4] sm:$0xf]
        %v200 = vld [vmem:[%s168 + $0xb8] sm:$0xf]
        %v201 = vld [vmem:[%s168 + $0xc0] sm:$0xf]
        %v202 = vld [vmem:[%s168 + $0xc4] sm:$0xf]
        %v203 = vld [vmem:[%s168 + $0xcc] sm:$0xf]
        %v204 = vld [vmem:[%s168 + $0xd0] sm:$0xf]
        %v205 = vld [vmem:[%s168 + $0x8] sm:$0x1]
        %v206 = vld [vmem:[%s168 + $0x14] sm:$0x1]
        %v207 = vld [vmem:[%s168 + $0x20] sm:$0x1]
        %v208 = vld [vmem:[%s168 + $0x2c] sm:$0x1]
        %v209 = vld [vmem:[%s168 + $0x38] sm:$0x1]
        %v210 = vld [vmem:[%s168 + $0x44] sm:$0x1]
        %v211 = vld [vmem:[%s168 + $0x50] sm:$0x1]
        %v212 = vld [vmem:[%s168 + $0x5c] sm:$0x1]
        %v213 = vld [vmem:[%s168 + $0x68] sm:$0x1]
        %v214 = vld [vmem:[%s168 + $0x74] sm:$0x1]
        %v215 = vld [vmem:[%s168 + $0x80] sm:$0x1]
        %v216 = vld [vmem:[%s168 + $0x8c] sm:$0x1]
        %v217 = vld [vmem:[%s168 + $0x98] sm:$0x1]
        %v218 = vld [vmem:[%s168 + $0xa4] sm:$0x1]
        %v219 = vld [vmem:[%s168 + $0xb0] sm:$0x1]
        %v220 = vld [vmem:[%s168 + $0xbc] sm:$0x1]
        %v221 = vld [vmem:[%s168 + $0xc8] sm:$0x1]
        %v222 = vld [vmem:[%s168 + $0xd4] sm:$0x1]
        %v223 = vld [vmem:[%s168] sm:$0xe]
        %v224 = vld [vmem:[%s168 + $0xc] sm:$0xe]
        %v225 = vld [vmem:[%s168 + $0x18] sm:$0xe]
        %v226 = vld [vmem:[%s168 + $0x24] sm:$0xe]
        %v227 = vld [vmem:[%s168 + $0x30] sm:$0xe]
        %v228 = vld [vmem:[%s168 + $0x3c] sm:$0xe]
        %v229 = vld [vmem:[%s168 + $0x48] sm:$0xe]
        %v230 = vld [vmem:[%s168 + $0x54] sm:$0xe]
        %v231 = vld [vmem:[%s168 + $0x60] sm:$0xe]
        %v232 = vld [vmem:[%s168 + $0x6c] sm:$0xe]
        %v233 = vld [vmem:[%s168 + $0x78] sm:$0xe]
        %v234 = vld [vmem:[%s168 + $0x84] sm:$0xe]
        %v235 = vld [vmem:[%s168 + $0x90] sm:$0xe]
        %v236 = vld [vmem:[%s168 + $0x9c] sm:$0xe]
        %v237 = vld [vmem:[%s168 + $0xa8] sm:$0xe]
        %v238 = vld [vmem:[%s168 + $0xb4] sm:$0xe]
        %v239 = vld [vmem:[%s168 + $0xc0] sm:$0xe]
        %v240 = vld [vmem:[%s168 + $0xcc] sm:$0xe]
        %v241 = vld [vmem:[%s1] sm:$0xf]
        %v242 = vld [vmem:[%s1 + $0x4] sm:$0xf]
        %v243 = vld [vmem:[%s1 + $0x8] sm:$0xf]
        %v244 = vld [vmem:[%s1 + $0xc] sm:$0xf]
        %v245 = vld [vmem:[%s1 + $0x10] sm:$0xf]
        %v246 = vld [vmem:[%s1 + $0x14] sm:$0xf]
        %v247 = vld [vmem:[%s1 + $0x18] sm:$0xf]
        %v248 = vld [vmem:[%s1 + $0x1c] sm:$0xf]
        %v249 = vld [vmem:[%s1 + $0x20] sm:$0xf]
        %v250 = vld [vmem:[%s1 + $0x24] sm:$0xf]
        %v251 = vld [vmem:[%s1 + $0x28] sm:$0xf]
        %v252 = vld [vmem:[%s1 + $0x2c] sm:$0xf]
        %v253 = vld [vmem:[%s1 + $0x30] sm:$0xf]
        %v254 = vld [vmem:[%s1 + $0x34] sm:$0xf]
        %v255 = vld [vmem:[%s1 + $0x38] sm:$0xf]
        %v256 = vld [vmem:[%s1 + $0x3c] sm:$0xf]
        %vm257 = vsmask.f32 3328
        %vm258 = vsmask.f32 7440
        %vm259 = vmor %vm257, %vm258
        %v261 = vshrl.u32 %v169, 16
        %v263 = vrot.slane %v261, 4
        %v264 = vshll.u32 %v169, 16
        %v266 = vrot.slane %v264, 5
        %v267 = vor.u32 %v263, %v266
        %v268 = vrot.slane %v267, 4
        %v270 = vshll.u32 %v170, 16
        %v272 = vrot.slane %v270, 5
        %v273 = vsel %vm259, %v268, %v272
        %v274 = vshrl.u32 %v170, 16
        %v276 = vrot.slane %v274, 4
        %v277 = vor.u32 %v276, %v272
        %v278 = vrot.slane %v277, 4
        %v280 = vshll.u32 %v205, 16
        %v282 = vrot.slane %v280, 5
        %v283 = vsel %vm259, %v278, %v282
        %v285 = vshrl.u32 %v171, 16
        %v287 = vrot.slane %v285, 4
        %v288 = vshll.u32 %v171, 16
        %v290 = vrot.slane %v288, 5
        %v291 = vor.u32 %v287, %v290
        %v292 = vrot.slane %v291, 4
        %v294 = vshll.u32 %v172, 16
        %v296 = vrot.slane %v294, 5
        %v297 = vsel %vm259, %v292, %v296
        %v298 = vshrl.u32 %v172, 16
        %v300 = vrot.slane %v298, 4
        %v301 = vor.u32 %v300, %v296
        %v302 = vrot.slane %v301, 4
        %v304 = vshll.u32 %v206, 16
        %v306 = vrot.slane %v304, 5
        %v307 = vsel %vm259, %v302, %v306
        %v309 = vshrl.u32 %v173, 16
        %v311 = vrot.slane %v309, 4
        %v312 = vshll.u32 %v173, 16
        %v314 = vrot.slane %v312, 5
        %v315 = vor.u32 %v311, %v314
        %v316 = vrot.slane %v315, 4
        %v318 = vshll.u32 %v174, 16
        %v320 = vrot.slane %v318, 5
        %v321 = vsel %vm259, %v316, %v320
        %v322 = vshrl.u32 %v174, 16
        %v324 = vrot.slane %v322, 4
        %v325 = vor.u32 %v324, %v320
        %v326 = vrot.slane %v325, 4
        %v328 = vshll.u32 %v207, 16
        %v330 = vrot.slane %v328, 5
        %v331 = vsel %vm259, %v326, %v330
        %v333 = vshrl.u32 %v175, 16
        %v335 = vrot.slane %v333, 4
        %v336 = vshll.u32 %v175, 16
        %v338 = vrot.slane %v336, 5
        %v339 = vor.u32 %v335, %v338
        %v340 = vrot.slane %v339, 4
        %v342 = vshll.u32 %v176, 16
        %v344 = vrot.slane %v342, 5
        %v345 = vsel %vm259, %v340, %v344
        %v346 = vshrl.u32 %v176, 16
        %v348 = vrot.slane %v346, 4
        %v349 = vor.u32 %v348, %v344
        %v350 = vrot.slane %v349, 4
        %v352 = vshll.u32 %v208, 16
        %v354 = vrot.slane %v352, 5
        %v355 = vsel %vm259, %v350, %v354
        %v357 = vshrl.u32 %v177, 16
        %v359 = vrot.slane %v357, 4
        %v360 = vshll.u32 %v177, 16
        %v362 = vrot.slane %v360, 5
        %v363 = vor.u32 %v359, %v362
        %v364 = vrot.slane %v363, 4
        %v366 = vshll.u32 %v178, 16
        %v368 = vrot.slane %v366, 5
        %v369 = vsel %vm259, %v364, %v368
        %v370 = vshrl.u32 %v178, 16
        %v372 = vrot.slane %v370, 4
        %v373 = vor.u32 %v372, %v368
        %v374 = vrot.slane %v373, 4
        %v376 = vshll.u32 %v209, 16
        %v378 = vrot.slane %v376, 5
        %v379 = vsel %vm259, %v374, %v378
        %v381 = vshrl.u32 %v179, 16
        %v383 = vrot.slane %v381, 4
        %v384 = vshll.u32 %v179, 16
        %v386 = vrot.slane %v384, 5
        %v387 = vor.u32 %v383, %v386
        %v388 = vrot.slane %v387, 4
        %v390 = vshll.u32 %v180, 16
        %v392 = vrot.slane %v390, 5
        %v393 = vsel %vm259, %v388, %v392
        %v394 = vshrl.u32 %v180, 16
        %v396 = vrot.slane %v394, 4
        %v397 = vor.u32 %v396, %v392
        %v398 = vrot.slane %v397, 4
        %v400 = vshll.u32 %v210, 16
        %v402 = vrot.slane %v400, 5
        %v403 = vsel %vm259, %v398, %v402
        %v405 = vshrl.u32 %v181, 16
        %v407 = vrot.slane %v405, 4
        %v408 = vshll.u32 %v181, 16
        %v410 = vrot.slane %v408, 5
        %v411 = vor.u32 %v407, %v410
        %v412 = vrot.slane %v411, 4
        %v414 = vshll.u32 %v182, 16
        %v416 = vrot.slane %v414, 5
        %v417 = vsel %vm259, %v412, %v416
        %v418 = vshrl.u32 %v182, 16
        %v420 = vrot.slane %v418, 4
        %v421 = vor.u32 %v420, %v416
        %v422 = vrot.slane %v421, 4
        %v424 = vshll.u32 %v211, 16
        %v426 = vrot.slane %v424, 5
        %v427 = vsel %vm259, %v422, %v426
        %v429 = vshrl.u32 %v183, 16
        %v431 = vrot.slane %v429, 4
        %v432 = vshll.u32 %v183, 16
        %v434 = vrot.slane %v432, 5
        %v435 = vor.u32 %v431, %v434
        %v436 = vrot.slane %v435, 4
        %v438 = vshll.u32 %v184, 16
        %v440 = vrot.slane %v438, 5
        %v441 = vsel %vm259, %v436, %v440
        %v442 = vshrl.u32 %v184, 16
        %v444 = vrot.slane %v442, 4
        %v445 = vor.u32 %v444, %v440
        %v446 = vrot.slane %v445, 4
        %v448 = vshll.u32 %v212, 16
        %v450 = vrot.slane %v448, 5
        %v451 = vsel %vm259, %v446, %v450
        %v453 = vshrl.u32 %v185, 16
        %v455 = vrot.slane %v453, 4
        %v456 = vshll.u32 %v185, 16
        %v458 = vrot.slane %v456, 5
        %v459 = vor.u32 %v455, %v458
        %v460 = vrot.slane %v459, 4
        %v462 = vshll.u32 %v186, 16
        %v464 = vrot.slane %v462, 5
        %v465 = vsel %vm259, %v460, %v464
        %v466 = vshrl.u32 %v186, 16
        %v468 = vrot.slane %v466, 4
        %v469 = vor.u32 %v468, %v464
        %v470 = vrot.slane %v469, 4
        %v472 = vshll.u32 %v213, 16
        %v474 = vrot.slane %v472, 5
        %v475 = vsel %vm259, %v470, %v474
        %v477 = vshrl.u32 %v187, 16
        %v479 = vrot.slane %v477, 4
        %v480 = vshll.u32 %v187, 16
        %v482 = vrot.slane %v480, 5
        %v483 = vor.u32 %v479, %v482
        %v484 = vrot.slane %v483, 4
        %v486 = vshll.u32 %v188, 16
        %v488 = vrot.slane %v486, 5
        %v489 = vsel %vm259, %v484, %v488
        %v490 = vshrl.u32 %v188, 16
        %v492 = vrot.slane %v490, 4
        %v493 = vor.u32 %v492, %v488
        %v494 = vrot.slane %v493, 4
        %v496 = vshll.u32 %v214, 16
        %v498 = vrot.slane %v496, 5
        %v499 = vsel %vm259, %v494, %v498
        %v501 = vshrl.u32 %v189, 16
        %v503 = vrot.slane %v501, 4
        %v504 = vshll.u32 %v189, 16
        %v506 = vrot.slane %v504, 5
        %v507 = vor.u32 %v503, %v506
        %v508 = vrot.slane %v507, 4
        %v510 = vshll.u32 %v190, 16
        %v512 = vrot.slane %v510, 5
        %v513 = vsel %vm259, %v508, %v512
        %v514 = vshrl.u32 %v190, 16
        %v516 = vrot.slane %v514, 4
        %v517 = vor.u32 %v516, %v512
        %v518 = vrot.slane %v517, 4
        %v520 = vshll.u32 %v215, 16
        %v522 = vrot.slane %v520, 5
        %v523 = vsel %vm259, %v518, %v522
        %v525 = vshrl.u32 %v191, 16
        %v527 = vrot.slane %v525, 4
        %v528 = vshll.u32 %v191, 16
        %v530 = vrot.slane %v528, 5
        %v531 = vor.u32 %v527, %v530
        %v532 = vrot.slane %v531, 4
        %v534 = vshll.u32 %v192, 16
        %v536 = vrot.slane %v534, 5
        %v537 = vsel %vm259, %v532, %v536
        %v538 = vshrl.u32 %v192, 16
        %v540 = vrot.slane %v538, 4
        %v541 = vor.u32 %v540, %v536
        %v542 = vrot.slane %v541, 4
        %v544 = vshll.u32 %v216, 16
        %v546 = vrot.slane %v544, 5
        %v547 = vsel %vm259, %v542, %v546
        %v549 = vshrl.u32 %v193, 16
        %v551 = vrot.slane %v549, 4
        %v552 = vshll.u32 %v193, 16
        %v554 = vrot.slane %v552, 5
        %v555 = vor.u32 %v551, %v554
        %v556 = vrot.slane %v555, 4
        %v558 = vshll.u32 %v194, 16
        %v560 = vrot.slane %v558, 5
        %v561 = vsel %vm259, %v556, %v560
        %v562 = vshrl.u32 %v194, 16
        %v564 = vrot.slane %v562, 4
        %v565 = vor.u32 %v564, %v560
        %v566 = vrot.slane %v565, 4
        %v568 = vshll.u32 %v217, 16
        %v570 = vrot.slane %v568, 5
        %v571 = vsel %vm259, %v566, %v570
        %v573 = vshrl.u32 %v195, 16
        %v575 = vrot.slane %v573, 4
        %v576 = vshll.u32 %v195, 16
        %v578 = vrot.slane %v576, 5
        %v579 = vor.u32 %v575, %v578
        %v580 = vrot.slane %v579, 4
        %v582 = vshll.u32 %v196, 16
        %v584 = vrot.slane %v582, 5
        %v585 = vsel %vm259, %v580, %v584
        %v586 = vshrl.u32 %v196, 16
        %v588 = vrot.slane %v586, 4
        %v589 = vor.u32 %v588, %v584
        %v590 = vrot.slane %v589, 4
        %v592 = vshll.u32 %v218, 16
        %v594 = vrot.slane %v592, 5
        %v595 = vsel %vm259, %v590, %v594
        %v597 = vshrl.u32 %v197, 16
        %v599 = vrot.slane %v597, 4
        %v600 = vshll.u32 %v197, 16
        %v602 = vrot.slane %v600, 5
        %v603 = vor.u32 %v599, %v602
        %v604 = vrot.slane %v603, 4
        %v606 = vshll.u32 %v198, 16
        %v608 = vrot.slane %v606, 5
        %v609 = vsel %vm259, %v604, %v608
        %v610 = vshrl.u32 %v198, 16
        %v612 = vrot.slane %v610, 4
        %v613 = vor.u32 %v612, %v608
        %v614 = vrot.slane %v613, 4
        %v616 = vshll.u32 %v219, 16
        %v618 = vrot.slane %v616, 5
        %v619 = vsel %vm259, %v614, %v618
        %v621 = vshrl.u32 %v199, 16
        %v623 = vrot.slane %v621, 4
        %v624 = vshll.u32 %v199, 16
        %v626 = vrot.slane %v624, 5
        %v627 = vor.u32 %v623, %v626
        %v628 = vrot.slane %v627, 4
        %v630 = vshll.u32 %v200, 16
        %v632 = vrot.slane %v630, 5
        %v633 = vsel %vm259, %v628, %v632
        %v634 = vshrl.u32 %v200, 16
        %v636 = vrot.slane %v634, 4
        %v637 = vor.u32 %v636, %v632
        %v638 = vrot.slane %v637, 4
        %v640 = vshll.u32 %v220, 16
        %v642 = vrot.slane %v640, 5
        %v643 = vsel %vm259, %v638, %v642
        %v644 = vld [vmem:[%s1 + $0x40] sm:$0xf]
        %v645 = vld [vmem:[%s1 + $0x44] sm:$0xf]
        %v646 = vld [vmem:[%s1 + $0x48] sm:$0xf]
        %v647 = vld [vmem:[%s1 + $0x4c] sm:$0xf]
        %v648 = vld [vmem:[%s1 + $0x50] sm:$0xf]
        %v649 = vld [vmem:[%s1 + $0x54] sm:$0xf]
        %v650 = vld [vmem:[%s1 + $0x58] sm:$0xf]
        %v651 = vld [vmem:[%s1 + $0x5c] sm:$0xf]
        %v652 = vld [vmem:[%s1 + $0x60] sm:$0xf]
        %v653 = vld [vmem:[%s1 + $0x64] sm:$0xf]
        %v654 = vld [vmem:[%s1 + $0x68] sm:$0xf]
        %v655 = vld [vmem:[%s1 + $0x6c] sm:$0xf]
        %v656 = vld [vmem:[%s1 + $0x70] sm:$0xf]
        %v657 = vld [vmem:[%s1 + $0x74] sm:$0xf]
        %v658 = vld [vmem:[%s1 + $0x78] sm:$0xf]
        %v659 = vld [vmem:[%s1 + $0x7c] sm:$0xf]
        %v660 = vunpack.c.l.b16 %v273
        %v661 = vunpack.c.l.b16 %v283
        %v662 = vunpack.c.l.b16 %v297
        %v663 = vunpack.c.l.b16 %v307
        %v664 = vunpack.c.l.b16 %v321
        %v665 = vunpack.c.l.b16 %v331
        %v666 = vunpack.c.l.b16 %v345
        %v667 = vunpack.c.l.b16 %v355
        %v668 = vunpack.c.l.b16 %v369
        %v669 = vunpack.c.l.b16 %v379
        %v670 = vunpack.c.l.b16 %v393
        %v671 = vunpack.c.l.b16 %v403
        %v672 = vunpack.c.l.b16 %v417
        %v673 = vunpack.c.l.b16 %v427
        %v674 = vunpack.c.l.b16 %v441
        %v675 = vunpack.c.l.b16 %v451
        %v676 = vunpack.c.l.b16 %v465
        %v677 = vunpack.c.l.b16 %v475
        %v678 = vunpack.c.l.b16 %v489
        %v679 = vunpack.c.l.b16 %v499
        %v680 = vunpack.c.l.b16 %v513
        %v681 = vunpack.c.l.b16 %v523
        %v682 = vunpack.c.l.b16 %v537
        %v683 = vunpack.c.l.b16 %v547
        %v684 = vunpack.c.l.b16 %v561
        %v685 = vunpack.c.l.b16 %v571
        %v686 = vunpack.c.l.b16 %v585
        %v687 = vunpack.c.l.b16 %v595
        %v688 = vunpack.c.l.b16 %v609
        %v689 = vunpack.c.l.b16 %v619
        %v690 = vunpack.c.l.b16 %v633
        %v691 = vunpack.c.l.b16 %v643
        %v692 = vpack.c.b16 %v661, %v660
        %v693 = vpack.c.b16 %v663, %v662
        %v694 = vpack.c.b16 %v665, %v664
        %v695 = vpack.c.b16 %v667, %v666
        %v696 = vpack.c.b16 %v669, %v668
        %v697 = vpack.c.b16 %v671, %v670
        %v698 = vpack.c.b16 %v673, %v672
        %v699 = vpack.c.b16 %v675, %v674
        %v700 = vpack.c.b16 %v677, %v676
        %v701 = vpack.c.b16 %v679, %v678
        %v702 = vpack.c.b16 %v681, %v680
        %v703 = vpack.c.b16 %v683, %v682
        %v704 = vpack.c.b16 %v685, %v684
        %v705 = vpack.c.b16 %v687, %v686
        %v706 = vpack.c.b16 %v689, %v688
        %v707 = vpack.c.b16 %v691, %v690
        %v740 = vunpack.c.l.b16 %v644
        %v741 = vunpack.c.l.b16 %v645
        %v742 = vunpack.c.l.b16 %v646
        %v743 = vunpack.c.l.b16 %v647
        %v744 = vunpack.c.l.b16 %v648
        %v745 = vunpack.c.l.b16 %v649
        %v746 = vunpack.c.l.b16 %v650
        %v747 = vunpack.c.l.b16 %v651
        %v748 = vunpack.c.l.b16 %v652
        %v749 = vunpack.c.l.b16 %v653
        %v750 = vunpack.c.l.b16 %v654
        %v751 = vunpack.c.l.b16 %v655
        %v752 = vunpack.c.l.b16 %v656
        %v753 = vunpack.c.l.b16 %v657
        %v754 = vunpack.c.l.b16 %v658
        %v755 = vunpack.c.l.b16 %v659
        %v756 = vpack.c.b16 %v741, %v740
        %v757 = vpack.c.b16 %v743, %v742
        %v758 = vpack.c.b16 %v745, %v744
        %v759 = vpack.c.b16 %v747, %v746
        %v760 = vpack.c.b16 %v749, %v748
        %v761 = vpack.c.b16 %v751, %v750
        %v762 = vpack.c.b16 %v753, %v752
        %v763 = vpack.c.b16 %v755, %v754
        %772 = vmatpush.bf16.msra.mxu0 %v763
        %773 = vmatpush.bf16.msra.mxu0 %v762
        %774 = vmatpush.bf16.msra.mxu0 %v761
        %775 = vmatpush.bf16.msra.mxu0 %v760
        %776 = vmatpush.bf16.msra.mxu0 %v759
        %777 = vmatpush.bf16.msra.mxu0 %v758
        %778 = vmatpush.bf16.msra.mxu0 %v757
        %779 = vmatpush.bf16.msra.mxu0 %v756
        %780 = vmatmul.bf16.gmra.mxu0 %v692
        %v781 = vpop.f32.mrf.mxu0
        %v782 = vadd.f32 0.0, %v781
        %v783 = vpop.f32.mrf.mxu0
        %v784 = vadd.f32 0.0, %v783
        %785 = vmatmul.bf16.gmra.mxu0 %v693
        %v786 = vpop.f32.mrf.mxu0
        %v787 = vadd.f32 0.0, %v786
        %v788 = vpop.f32.mrf.mxu0
        %v789 = vadd.f32 0.0, %v788
        %790 = vmatmul.bf16.gmra.mxu0 %v694
        %v791 = vpop.f32.mrf.mxu0
        %v792 = vadd.f32 0.0, %v791
        %v793 = vpop.f32.mrf.mxu0
        %v794 = vadd.f32 0.0, %v793
        %795 = vmatmul.bf16.gmra.mxu0 %v695
        %v796 = vpop.f32.mrf.mxu0
        %v797 = vadd.f32 0.0, %v796
        %v798 = vpop.f32.mrf.mxu0
        %v799 = vadd.f32 0.0, %v798
        %800 = vmatmul.bf16.gmra.mxu0 %v696
        %v801 = vpop.f32.mrf.mxu0
        %v802 = vadd.f32 0.0, %v801
        %v803 = vpop.f32.mrf.mxu0
        %v804 = vadd.f32 0.0, %v803
        %805 = vmatmul.bf16.gmra.mxu0 %v697
        %v806 = vpop.f32.mrf.mxu0
        %v807 = vadd.f32 0.0, %v806
        %v808 = vpop.f32.mrf.mxu0
        %v809 = vadd.f32 0.0, %v808
        %810 = vmatmul.bf16.gmra.mxu0 %v698
        %v811 = vpop.f32.mrf.mxu0
        %v812 = vadd.f32 0.0, %v811
        %v813 = vpop.f32.mrf.mxu0
        %v814 = vadd.f32 0.0, %v813
        %815 = vmatmul.bf16.gmra.mxu0 %v699
        %v816 = vpop.f32.mrf.mxu0
        %v817 = vadd.f32 0.0, %v816
        %v818 = vpop.f32.mrf.mxu0
        %v819 = vadd.f32 0.0, %v818
        %820 = vmatmul.bf16.gmra.mxu0 %v700
        %v821 = vpop.f32.mrf.mxu0
        %v822 = vadd.f32 0.0, %v821
        %v823 = vpop.f32.mrf.mxu0
        %v824 = vadd.f32 0.0, %v823
        %825 = vmatmul.bf16.gmra.mxu0 %v701
        %v826 = vpop.f32.mrf.mxu0
        %v827 = vadd.f32 0.0, %v826
        %v828 = vpop.f32.mrf.mxu0
        %v829 = vadd.f32 0.0, %v828
        %830 = vmatmul.bf16.gmra.mxu0 %v702
        %v831 = vpop.f32.mrf.mxu0
        %v832 = vadd.f32 0.0, %v831
        %v833 = vpop.f32.mrf.mxu0
        %v834 = vadd.f32 0.0, %v833
        %835 = vmatmul.bf16.gmra.mxu0 %v703
        %v836 = vpop.f32.mrf.mxu0
        %v837 = vadd.f32 0.0, %v836
        %v838 = vpop.f32.mrf.mxu0
        %v839 = vadd.f32 0.0, %v838
        %840 = vmatmul.bf16.gmra.mxu0 %v704
        %v841 = vpop.f32.mrf.mxu0
        %v842 = vadd.f32 0.0, %v841
        %v843 = vpop.f32.mrf.mxu0
        %v844 = vadd.f32 0.0, %v843
        %845 = vmatmul.bf16.gmra.mxu0 %v705
        %v846 = vpop.f32.mrf.mxu0
        %v847 = vadd.f32 0.0, %v846
        %v848 = vpop.f32.mrf.mxu0
        %v849 = vadd.f32 0.0, %v848
        %850 = vmatmul.bf16.gmra.mxu0 %v706
        %v851 = vpop.f32.mrf.mxu0
        %v852 = vadd.f32 0.0, %v851
        %v853 = vpop.f32.mrf.mxu0
        %v854 = vadd.f32 0.0, %v853
        %855 = vmatmul.bf16.gmra.mxu0 %v707
        %v856 = vpop.f32.mrf.mxu0
        %v857 = vadd.f32 0.0, %v856
        %v858 = vpop.f32.mrf.mxu0
        %v859 = vadd.f32 0.0, %v858
        %860 = vdwg.mxu0
        %v893 = vunpack.c.l.b16 %v169
        %v894 = vunpack.c.l.b16 %v170
        %v895 = vunpack.c.l.b16 %v171
        %v896 = vunpack.c.l.b16 %v172
        %v897 = vunpack.c.l.b16 %v173
        %v898 = vunpack.c.l.b16 %v174
        %v899 = vunpack.c.l.b16 %v175
        %v900 = vunpack.c.l.b16 %v176
        %v901 = vunpack.c.l.b16 %v177
        %v902 = vunpack.c.l.b16 %v178
        %v903 = vunpack.c.l.b16 %v179
        %v904 = vunpack.c.l.b16 %v180
        %v905 = vunpack.c.l.b16 %v181
        %v906 = vunpack.c.l.b16 %v182
        %v907 = vunpack.c.l.b16 %v183
        %v908 = vunpack.c.l.b16 %v184
        %v909 = vunpack.c.l.b16 %v185
        %v910 = vunpack.c.l.b16 %v186
        %v911 = vunpack.c.l.b16 %v187
        %v912 = vunpack.c.l.b16 %v188
        %v913 = vunpack.c.l.b16 %v189
        %v914 = vunpack.c.l.b16 %v190
        %v915 = vunpack.c.l.b16 %v191
        %v916 = vunpack.c.l.b16 %v192
        %v917 = vunpack.c.l.b16 %v193
        %v918 = vunpack.c.l.b16 %v194
        %v919 = vunpack.c.l.b16 %v195
        %v920 = vunpack.c.l.b16 %v196
        %v921 = vunpack.c.l.b16 %v197
        %v922 = vunpack.c.l.b16 %v198
        %v923 = vunpack.c.l.b16 %v199
        %v924 = vunpack.c.l.b16 %v200
        %v925 = vpack.c.b16 %v894, %v893
        %v926 = vpack.c.b16 %v896, %v895
        %v927 = vpack.c.b16 %v898, %v897
        %v928 = vpack.c.b16 %v900, %v899
        %v929 = vpack.c.b16 %v902, %v901
        %v930 = vpack.c.b16 %v904, %v903
        %v931 = vpack.c.b16 %v906, %v905
        %v932 = vpack.c.b16 %v908, %v907
        %v933 = vpack.c.b16 %v910, %v909
        %v934 = vpack.c.b16 %v912, %v911
        %v935 = vpack.c.b16 %v914, %v913
        %v936 = vpack.c.b16 %v916, %v915
        %v937 = vpack.c.b16 %v918, %v917
        %v938 = vpack.c.b16 %v920, %v919
        %v939 = vpack.c.b16 %v922, %v921
        %v940 = vpack.c.b16 %v924, %v923
        %v973 = vunpack.c.l.b16 %v241
        %v974 = vunpack.c.l.b16 %v242
        %v975 = vunpack.c.l.b16 %v243
        %v976 = vunpack.c.l.b16 %v244
        %v977 = vunpack.c.l.b16 %v245
        %v978 = vunpack.c.l.b16 %v246
        %v979 = vunpack.c.l.b16 %v247
        %v980 = vunpack.c.l.b16 %v248
        %v981 = vunpack.c.l.b16 %v249
        %v982 = vunpack.c.l.b16 %v250
        %v983 = vunpack.c.l.b16 %v251
        %v984 = vunpack.c.l.b16 %v252
        %v985 = vunpack.c.l.b16 %v253
        %v986 = vunpack.c.l.b16 %v254
        %v987 = vunpack.c.l.b16 %v255
        %v988 = vunpack.c.l.b16 %v256
        %v989 = vpack.c.b16 %v974, %v973
        %v990 = vpack.c.b16 %v976, %v975
        %v991 = vpack.c.b16 %v978, %v977
        %v992 = vpack.c.b16 %v980, %v979
        %v993 = vpack.c.b16 %v982, %v981
        %v994 = vpack.c.b16 %v984, %v983
        %v995 = vpack.c.b16 %v986, %v985
        %v996 = vpack.c.b16 %v988, %v987
        %1005 = vmatpush.bf16.msra.mxu0 %v996
        %1006 = vmatpush.bf16.msra.mxu0 %v995
        %1007 = vmatpush.bf16.msra.mxu0 %v994
        %1008 = vmatpush.bf16.msra.mxu0 %v993
        %1009 = vmatpush.bf16.msra.mxu0 %v992
        %1010 = vmatpush.bf16.msra.mxu0 %v991
        %1011 = vmatpush.bf16.msra.mxu0 %v990
        %1012 = vmatpush.bf16.msra.mxu0 %v989
        %1013 = vmatmul.bf16.gmra.mxu0 %v925
        %v1014 = vpop.f32.mrf.mxu0
        %v1015 = vadd.f32 %v782, %v1014
        %v1016 = vpop.f32.mrf.mxu0
        %v1017 = vadd.f32 %v784, %v1016
        %1018 = vmatmul.bf16.gmra.mxu0 %v926
        %v1019 = vpop.f32.mrf.mxu0
        %v1020 = vadd.f32 %v787, %v1019
        %v1021 = vpop.f32.mrf.mxu0
        %v1022 = vadd.f32 %v789, %v1021
        %1023 = vmatmul.bf16.gmra.mxu0 %v927
        %v1024 = vpop.f32.mrf.mxu0
        %v1025 = vadd.f32 %v792, %v1024
        %v1026 = vpop.f32.mrf.mxu0
        %v1027 = vadd.f32 %v794, %v1026
        %1028 = vmatmul.bf16.gmra.mxu0 %v928
        %v1029 = vpop.f32.mrf.mxu0
        %v1030 = vadd.f32 %v797, %v1029
        %v1031 = vpop.f32.mrf.mxu0
        %v1032 = vadd.f32 %v799, %v1031
        %1033 = vmatmul.bf16.gmra.mxu0 %v929
        %v1034 = vpop.f32.mrf.mxu0
        %v1035 = vadd.f32 %v802, %v1034
        %v1036 = vpop.f32.mrf.mxu0
        %v1037 = vadd.f32 %v804, %v1036
        %1038 = vmatmul.bf16.gmra.mxu0 %v930
        %v1039 = vpop.f32.mrf.mxu0
        %v1040 = vadd.f32 %v807, %v1039
        %v1041 = vpop.f32.mrf.mxu0
        %v1042 = vadd.f32 %v809, %v1041
        %1043 = vmatmul.bf16.gmra.mxu0 %v931
        %v1044 = vpop.f32.mrf.mxu0
        %v1045 = vadd.f32 %v812, %v1044
        %v1046 = vpop.f32.mrf.mxu0
        %v1047 = vadd.f32 %v814, %v1046
        %1048 = vmatmul.bf16.gmra.mxu0 %v932
        %v1049 = vpop.f32.mrf.mxu0
        %v1050 = vadd.f32 %v817, %v1049
        %v1051 = vpop.f32.mrf.mxu0
        %v1052 = vadd.f32 %v819, %v1051
        %1053 = vmatmul.bf16.gmra.mxu0 %v933
        %v1054 = vpop.f32.mrf.mxu0
        %v1055 = vadd.f32 %v822, %v1054
        %v1056 = vpop.f32.mrf.mxu0
        %v1057 = vadd.f32 %v824, %v1056
        %1058 = vmatmul.bf16.gmra.mxu0 %v934
        %v1059 = vpop.f32.mrf.mxu0
        %v1060 = vadd.f32 %v827, %v1059
        %v1061 = vpop.f32.mrf.mxu0
        %v1062 = vadd.f32 %v829, %v1061
        %1063 = vmatmul.bf16.gmra.mxu0 %v935
        %v1064 = vpop.f32.mrf.mxu0
        %v1065 = vadd.f32 %v832, %v1064
        %v1066 = vpop.f32.mrf.mxu0
        %v1067 = vadd.f32 %v834, %v1066
        %1068 = vmatmul.bf16.gmra.mxu0 %v936
        %v1069 = vpop.f32.mrf.mxu0
        %v1070 = vadd.f32 %v837, %v1069
        %v1071 = vpop.f32.mrf.mxu0
        %v1072 = vadd.f32 %v839, %v1071
        %1073 = vmatmul.bf16.gmra.mxu0 %v937
        %v1074 = vpop.f32.mrf.mxu0
        %v1075 = vadd.f32 %v842, %v1074
        %v1076 = vpop.f32.mrf.mxu0
        %v1077 = vadd.f32 %v844, %v1076
        %1078 = vmatmul.bf16.gmra.mxu0 %v938
        %v1079 = vpop.f32.mrf.mxu0
        %v1080 = vadd.f32 %v847, %v1079
        %v1081 = vpop.f32.mrf.mxu0
        %v1082 = vadd.f32 %v849, %v1081
        %1083 = vmatmul.bf16.gmra.mxu0 %v939
        %v1084 = vpop.f32.mrf.mxu0
        %v1085 = vadd.f32 %v852, %v1084
        %v1086 = vpop.f32.mrf.mxu0
        %v1087 = vadd.f32 %v854, %v1086
        %1088 = vmatmul.bf16.gmra.mxu0 %v940
        %v1089 = vpop.f32.mrf.mxu0
        %v1090 = vadd.f32 %v857, %v1089
        %v1091 = vpop.f32.mrf.mxu0
        %v1092 = vadd.f32 %v859, %v1091
        %1093 = vdwg.mxu0
        %vm1126 = vcmask 1042432
        %vm1127 = vcmask 1046532
        %vm1128 = vmor %vm1126, %vm1127
        %v1129 = vrot.slane %v223, 5
        %v1130 = vrot.slane %v1129, 4
        %v1131 = vrot.slane %v170, 5
        %v1132 = vsel %vm1128, %v1130, %v1131
        %v1133 = vrot.slane %v1131, 4
        %v1134 = vrot.slane %v205, 5
        %v1135 = vsel %vm1128, %v1133, %v1134
        %v1136 = vrot.slane %v224, 5
        %v1137 = vrot.slane %v1136, 4
        %v1138 = vrot.slane %v172, 5
        %v1139 = vsel %vm1128, %v1137, %v1138
        %v1140 = vrot.slane %v1138, 4
        %v1141 = vrot.slane %v206, 5
        %v1142 = vsel %vm1128, %v1140, %v1141
        %v1143 = vrot.slane %v225, 5
        %v1144 = vrot.slane %v1143, 4
        %v1145 = vrot.slane %v174, 5
        %v1146 = vsel %vm1128, %v1144, %v1145
        %v1147 = vrot.slane %v1145, 4
        %v1148 = vrot.slane %v207, 5
        %v1149 = vsel %vm1128, %v1147, %v1148
        %v1150 = vrot.slane %v226, 5
        %v1151 = vrot.slane %v1150, 4
        %v1152 = vrot.slane %v176, 5
        %v1153 = vsel %vm1128, %v1151, %v1152
        %v1154 = vrot.slane %v1152, 4
        %v1155 = vrot.slane %v208, 5
        %v1156 = vsel %vm1128, %v1154, %v1155
        %v1157 = vrot.slane %v227, 5
        %v1158 = vrot.slane %v1157, 4
        %v1159 = vrot.slane %v178, 5
        %v1160 = vsel %vm1128, %v1158, %v1159
        %v1161 = vrot.slane %v1159, 4
        %v1162 = vrot.slane %v209, 5
        %v1163 = vsel %vm1128, %v1161, %v1162
        %v1164 = vrot.slane %v228, 5
        %v1165 = vrot.slane %v1164, 4
        %v1166 = vrot.slane %v180, 5
        %v1167 = vsel %vm1128, %v1165, %v1166
        %v1168 = vrot.slane %v1166, 4
        %v1169 = vrot.slane %v210, 5
        %v1170 = vsel %vm1128, %v1168, %v1169
        %v1171 = vrot.slane %v229, 5
        %v1172 = vrot.slane %v1171, 4
        %v1173 = vrot.slane %v182, 5
        %v1174 = vsel %vm1128, %v1172, %v1173
        %v1175 = vrot.slane %v1173, 4
        %v1176 = vrot.slane %v211, 5
        %v1177 = vsel %vm1128, %v1175, %v1176
        %v1178 = vrot.slane %v230, 5
        %v1179 = vrot.slane %v1178, 4
        %v1180 = vrot.slane %v184, 5
        %v1181 = vsel %vm1128, %v1179, %v1180
        %v1182 = vrot.slane %v1180, 4
        %v1183 = vrot.slane %v212, 5
        %v1184 = vsel %vm1128, %v1182, %v1183
        %v1185 = vrot.slane %v231, 5
        %v1186 = vrot.slane %v1185, 4
        %v1187 = vrot.slane %v186, 5
        %v1188 = vsel %vm1128, %v1186, %v1187
        %v1189 = vrot.slane %v1187, 4
        %v1190 = vrot.slane %v213, 5
        %v1191 = vsel %vm1128, %v1189, %v1190
        %v1192 = vrot.slane %v232, 5
        %v1193 = vrot.slane %v1192, 4
        %v1194 = vrot.slane %v188, 5
        %v1195 = vsel %vm1128, %v1193, %v1194
        %v1196 = vrot.slane %v1194, 4
        %v1197 = vrot.slane %v214, 5
        %v1198 = vsel %vm1128, %v1196, %v1197
        %v1199 = vrot.slane %v233, 5
        %v1200 = vrot.slane %v1199, 4
        %v1201 = vrot.slane %v190, 5
        %v1202 = vsel %vm1128, %v1200, %v1201
        %v1203 = vrot.slane %v1201, 4
        %v1204 = vrot.slane %v215, 5
        %v1205 = vsel %vm1128, %v1203, %v1204
        %v1206 = vrot.slane %v234, 5
        %v1207 = vrot.slane %v1206, 4
        %v1208 = vrot.slane %v192, 5
        %v1209 = vsel %vm1128, %v1207, %v1208
        %v1210 = vrot.slane %v1208, 4
        %v1211 = vrot.slane %v216, 5
        %v1212 = vsel %vm1128, %v1210, %v1211
        %v1213 = vrot.slane %v235, 5
        %v1214 = vrot.slane %v1213, 4
        %v1215 = vrot.slane %v194, 5
        %v1216 = vsel %vm1128, %v1214, %v1215
        %v1217 = vrot.slane %v1215, 4
        %v1218 = vrot.slane %v217, 5
        %v1219 = vsel %vm1128, %v1217, %v1218
        %v1220 = vrot.slane %v236, 5
        %v1221 = vrot.slane %v1220, 4
        %v1222 = vrot.slane %v196, 5
        %v1223 = vsel %vm1128, %v1221, %v1222
        %v1224 = vrot.slane %v1222, 4
        %v1225 = vrot.slane %v218, 5
        %v1226 = vsel %vm1128, %v1224, %v1225
        %v1227 = vrot.slane %v237, 5
        %v1228 = vrot.slane %v1227, 4
        %v1229 = vrot.slane %v198, 5
        %v1230 = vsel %vm1128, %v1228, %v1229
        %v1231 = vrot.slane %v1229, 4
        %v1232 = vrot.slane %v219, 5
        %v1233 = vsel %vm1128, %v1231, %v1232
        %v1234 = vrot.slane %v238, 5
        %v1235 = vrot.slane %v1234, 4
        %v1236 = vrot.slane %v200, 5
        %v1237 = vsel %vm1128, %v1235, %v1236
        %v1238 = vrot.slane %v1236, 4
        %v1239 = vrot.slane %v220, 5
        %v1240 = vsel %vm1128, %v1238, %v1239
        %v1241 = vld [vmem:[%s1 + $0x80] sm:$0xf]
        %v1242 = vld [vmem:[%s1 + $0x84] sm:$0xf]
        %v1243 = vld [vmem:[%s1 + $0x88] sm:$0xf]
        %v1244 = vld [vmem:[%s1 + $0x8c] sm:$0xf]
        %v1245 = vld [vmem:[%s1 + $0x90] sm:$0xf]
        %v1246 = vld [vmem:[%s1 + $0x94] sm:$0xf]
        %v1247 = vld [vmem:[%s1 + $0x98] sm:$0xf]
        %v1248 = vld [vmem:[%s1 + $0x9c] sm:$0xf]
        %v1249 = vld [vmem:[%s1 + $0xa0] sm:$0xf]
        %v1250 = vld [vmem:[%s1 + $0xa4] sm:$0xf]
        %v1251 = vld [vmem:[%s1 + $0xa8] sm:$0xf]
        %v1252 = vld [vmem:[%s1 + $0xac] sm:$0xf]
        %v1253 = vld [vmem:[%s1 + $0xb0] sm:$0xf]
        %v1254 = vld [vmem:[%s1 + $0xb4] sm:$0xf]
        %v1255 = vld [vmem:[%s1 + $0xb8] sm:$0xf]
        %v1256 = vld [vmem:[%s1 + $0xbc] sm:$0xf]
        %v1257 = vunpack.c.l.b16 %v1132
        %v1258 = vunpack.c.l.b16 %v1135
        %v1259 = vunpack.c.l.b16 %v1139
        %v1260 = vunpack.c.l.b16 %v1142
        %v1261 = vunpack.c.l.b16 %v1146
        %v1262 = vunpack.c.l.b16 %v1149
        %v1263 = vunpack.c.l.b16 %v1153
        %v1264 = vunpack.c.l.b16 %v1156
        %v1265 = vunpack.c.l.b16 %v1160
        %v1266 = vunpack.c.l.b16 %v1163
        %v1267 = vunpack.c.l.b16 %v1167
        %v1268 = vunpack.c.l.b16 %v1170
        %v1269 = vunpack.c.l.b16 %v1174
        %v1270 = vunpack.c.l.b16 %v1177
        %v1271 = vunpack.c.l.b16 %v1181
        %v1272 = vunpack.c.l.b16 %v1184
        %v1273 = vunpack.c.l.b16 %v1188
        %v1274 = vunpack.c.l.b16 %v1191
        %v1275 = vunpack.c.l.b16 %v1195
        %v1276 = vunpack.c.l.b16 %v1198
        %v1277 = vunpack.c.l.b16 %v1202
        %v1278 = vunpack.c.l.b16 %v1205
        %v1279 = vunpack.c.l.b16 %v1209
        %v1280 = vunpack.c.l.b16 %v1212
        %v1281 = vunpack.c.l.b16 %v1216
        %v1282 = vunpack.c.l.b16 %v1219
        %v1283 = vunpack.c.l.b16 %v1223
        %v1284 = vunpack.c.l.b16 %v1226
        %v1285 = vunpack.c.l.b16 %v1230
        %v1286 = vunpack.c.l.b16 %v1233
        %v1287 = vunpack.c.l.b16 %v1237
        %v1288 = vunpack.c.l.b16 %v1240
        %v1289 = vpack.c.b16 %v1258, %v1257
        %v1290 = vpack.c.b16 %v1260, %v1259
        %v1291 = vpack.c.b16 %v1262, %v1261
        %v1292 = vpack.c.b16 %v1264, %v1263
        %v1293 = vpack.c.b16 %v1266, %v1265
        %v1294 = vpack.c.b16 %v1268, %v1267
        %v1295 = vpack.c.b16 %v1270, %v1269
        %v1296 = vpack.c.b16 %v1272, %v1271
        %v1297 = vpack.c.b16 %v1274, %v1273
        %v1298 = vpack.c.b16 %v1276, %v1275
        %v1299 = vpack.c.b16 %v1278, %v1277
        %v1300 = vpack.c.b16 %v1280, %v1279
        %v1301 = vpack.c.b16 %v1282, %v1281
        %v1302 = vpack.c.b16 %v1284, %v1283
        %v1303 = vpack.c.b16 %v1286, %v1285
        %v1304 = vpack.c.b16 %v1288, %v1287
        %v1337 = vunpack.c.l.b16 %v1241
        %v1338 = vunpack.c.l.b16 %v1242
        %v1339 = vunpack.c.l.b16 %v1243
        %v1340 = vunpack.c.l.b16 %v1244
        %v1341 = vunpack.c.l.b16 %v1245
        %v1342 = vunpack.c.l.b16 %v1246
        %v1343 = vunpack.c.l.b16 %v1247
        %v1344 = vunpack.c.l.b16 %v1248
        %v1345 = vunpack.c.l.b16 %v1249
        %v1346 = vunpack.c.l.b16 %v1250
        %v1347 = vunpack.c.l.b16 %v1251
        %v1348 = vunpack.c.l.b16 %v1252
        %v1349 = vunpack.c.l.b16 %v1253
        %v1350 = vunpack.c.l.b16 %v1254
        %v1351 = vunpack.c.l.b16 %v1255
        %v1352 = vunpack.c.l.b16 %v1256
        %v1353 = vpack.c.b16 %v1338, %v1337
        %v1354 = vpack.c.b16 %v1340, %v1339
        %v1355 = vpack.c.b16 %v1342, %v1341
        %v1356 = vpack.c.b16 %v1344, %v1343
        %v1357 = vpack.c.b16 %v1346, %v1345
        %v1358 = vpack.c.b16 %v1348, %v1347
        %v1359 = vpack.c.b16 %v1350, %v1349
        %v1360 = vpack.c.b16 %v1352, %v1351
        %1369 = vmatpush.bf16.msra.mxu0 %v1360
        %1370 = vmatpush.bf16.msra.mxu0 %v1359
        %1371 = vmatpush.bf16.msra.mxu0 %v1358
        %1372 = vmatpush.bf16.msra.mxu0 %v1357
        %1373 = vmatpush.bf16.msra.mxu0 %v1356
        %1374 = vmatpush.bf16.msra.mxu0 %v1355
        %1375 = vmatpush.bf16.msra.mxu0 %v1354
        %1376 = vmatpush.bf16.msra.mxu0 %v1353
        %1377 = vmatmul.bf16.gmra.mxu0 %v1289
        %v1378 = vpop.f32.mrf.mxu0
        %v1379 = vadd.f32 0.0, %v1378
        %v1380 = vpop.f32.mrf.mxu0
        %v1381 = vadd.f32 0.0, %v1380
        %1382 = vmatmul.bf16.gmra.mxu0 %v1290
        %v1383 = vpop.f32.mrf.mxu0
        %v1384 = vadd.f32 0.0, %v1383
        %v1385 = vpop.f32.mrf.mxu0
        %v1386 = vadd.f32 0.0, %v1385
        %1387 = vmatmul.bf16.gmra.mxu0 %v1291
        %v1388 = vpop.f32.mrf.mxu0
        %v1389 = vadd.f32 0.0, %v1388
        %v1390 = vpop.f32.mrf.mxu0
        %v1391 = vadd.f32 0.0, %v1390
        %1392 = vmatmul.bf16.gmra.mxu0 %v1292
        %v1393 = vpop.f32.mrf.mxu0
        %v1394 = vadd.f32 0.0, %v1393
        %v1395 = vpop.f32.mrf.mxu0
        %v1396 = vadd.f32 0.0, %v1395
        %1397 = vmatmul.bf16.gmra.mxu0 %v1293
        %v1398 = vpop.f32.mrf.mxu0
        %v1399 = vadd.f32 0.0, %v1398
        %v1400 = vpop.f32.mrf.mxu0
        %v1401 = vadd.f32 0.0, %v1400
        %1402 = vmatmul.bf16.gmra.mxu0 %v1294
        %v1403 = vpop.f32.mrf.mxu0
        %v1404 = vadd.f32 0.0, %v1403
        %v1405 = vpop.f32.mrf.mxu0
        %v1406 = vadd.f32 0.0, %v1405
        %1407 = vmatmul.bf16.gmra.mxu0 %v1295
        %v1408 = vpop.f32.mrf.mxu0
        %v1409 = vadd.f32 0.0, %v1408
        %v1410 = vpop.f32.mrf.mxu0
        %v1411 = vadd.f32 0.0, %v1410
        %1412 = vmatmul.bf16.gmra.mxu0 %v1296
        %v1413 = vpop.f32.mrf.mxu0
        %v1414 = vadd.f32 0.0, %v1413
        %v1415 = vpop.f32.mrf.mxu0
        %v1416 = vadd.f32 0.0, %v1415
        %1417 = vmatmul.bf16.gmra.mxu0 %v1297
        %v1418 = vpop.f32.mrf.mxu0
        %v1419 = vadd.f32 0.0, %v1418
        %v1420 = vpop.f32.mrf.mxu0
        %v1421 = vadd.f32 0.0, %v1420
        %1422 = vmatmul.bf16.gmra.mxu0 %v1298
        %v1423 = vpop.f32.mrf.mxu0
        %v1424 = vadd.f32 0.0, %v1423
        %v1425 = vpop.f32.mrf.mxu0
        %v1426 = vadd.f32 0.0, %v1425
        %1427 = vmatmul.bf16.gmra.mxu0 %v1299
        %v1428 = vpop.f32.mrf.mxu0
        %v1429 = vadd.f32 0.0, %v1428
        %v1430 = vpop.f32.mrf.mxu0
        %v1431 = vadd.f32 0.0, %v1430
        %1432 = vmatmul.bf16.gmra.mxu0 %v1300
        %v1433 = vpop.f32.mrf.mxu0
        %v1434 = vadd.f32 0.0, %v1433
        %v1435 = vpop.f32.mrf.mxu0
        %v1436 = vadd.f32 0.0, %v1435
        %1437 = vmatmul.bf16.gmra.mxu0 %v1301
        %v1438 = vpop.f32.mrf.mxu0
        %v1439 = vadd.f32 0.0, %v1438
        %v1440 = vpop.f32.mrf.mxu0
        %v1441 = vadd.f32 0.0, %v1440
        %1442 = vmatmul.bf16.gmra.mxu0 %v1302
        %v1443 = vpop.f32.mrf.mxu0
        %v1444 = vadd.f32 0.0, %v1443
        %v1445 = vpop.f32.mrf.mxu0
        %v1446 = vadd.f32 0.0, %v1445
        %1447 = vmatmul.bf16.gmra.mxu0 %v1303
        %v1448 = vpop.f32.mrf.mxu0
        %v1449 = vadd.f32 0.0, %v1448
        %v1450 = vpop.f32.mrf.mxu0
        %v1451 = vadd.f32 0.0, %v1450
        %1452 = vmatmul.bf16.gmra.mxu0 %v1304
        %v1453 = vpop.f32.mrf.mxu0
        %v1454 = vadd.f32 0.0, %v1453
        %v1455 = vpop.f32.mrf.mxu0
        %v1456 = vadd.f32 0.0, %v1455
        %1457 = vdwg.mxu0
        %v1458 = vadd.f32 %v1015, %v1379
        %v1459 = vadd.f32 %v1017, %v1381
        %v1460 = vadd.f32 %v1020, %v1384
        %v1461 = vadd.f32 %v1022, %v1386
        %v1462 = vadd.f32 %v1025, %v1389
        %v1463 = vadd.f32 %v1027, %v1391
        %v1464 = vadd.f32 %v1030, %v1394
        %v1465 = vadd.f32 %v1032, %v1396
        %v1466 = vadd.f32 %v1035, %v1399
        %v1467 = vadd.f32 %v1037, %v1401
        %v1468 = vadd.f32 %v1040, %v1404
        %v1469 = vadd.f32 %v1042, %v1406
        %v1470 = vadd.f32 %v1045, %v1409
        %v1471 = vadd.f32 %v1047, %v1411
        %v1472 = vadd.f32 %v1050, %v1414
        %v1473 = vadd.f32 %v1052, %v1416
        %v1474 = vadd.f32 %v1055, %v1419
        %v1475 = vadd.f32 %v1057, %v1421
        %v1476 = vadd.f32 %v1060, %v1424
        %v1477 = vadd.f32 %v1062, %v1426
        %v1478 = vadd.f32 %v1065, %v1429
        %v1479 = vadd.f32 %v1067, %v1431
        %v1480 = vadd.f32 %v1070, %v1434
        %v1481 = vadd.f32 %v1072, %v1436
        %v1482 = vadd.f32 %v1075, %v1439
        %v1483 = vadd.f32 %v1077, %v1441
        %v1484 = vadd.f32 %v1080, %v1444
        %v1485 = vadd.f32 %v1082, %v1446
        %v1486 = vadd.f32 %v1085, %v1449
        %v1487 = vadd.f32 %v1087, %v1451
        %v1488 = vadd.f32 %v1090, %v1454
        %v1489 = vadd.f32 %v1092, %v1456
        %v1490 = vld [vmem:[%s1 + $0xc0] sm:$0xf]
        %v1491 = vld [vmem:[%s1 + $0xc4] sm:$0xf]
        %v1492 = vld [vmem:[%s1 + $0xc8] sm:$0xf]
        %v1493 = vld [vmem:[%s1 + $0xcc] sm:$0xf]
        %v1494 = vld [vmem:[%s1 + $0xd0] sm:$0xf]
        %v1495 = vld [vmem:[%s1 + $0xd4] sm:$0xf]
        %v1496 = vld [vmem:[%s1 + $0xd8] sm:$0xf]
        %v1497 = vld [vmem:[%s1 + $0xdc] sm:$0xf]
        %v1498 = vld [vmem:[%s1 + $0xe0] sm:$0xf]
        %v1499 = vld [vmem:[%s1 + $0xe4] sm:$0xf]
        %v1500 = vld [vmem:[%s1 + $0xe8] sm:$0xf]
        %v1501 = vld [vmem:[%s1 + $0xec] sm:$0xf]
        %v1502 = vld [vmem:[%s1 + $0xf0] sm:$0xf]
        %v1503 = vld [vmem:[%s1 + $0xf4] sm:$0xf]
        %v1504 = vld [vmem:[%s1 + $0xf8] sm:$0xf]
        %v1505 = vld [vmem:[%s1 + $0xfc] sm:$0xf]
        %v1508 = vunpack.c.l.b16 %v201
        %v1509 = vunpack.c.l.b16 %v202
        %v1510 = vpack.c.b16 %v1509, %v1508
        %v1528 = vunpack.c.l.b16 %v1490
        %v1529 = vunpack.c.l.b16 %v1491
        %v1530 = vunpack.c.l.b16 %v1492
        %v1531 = vunpack.c.l.b16 %v1493
        %v1532 = vunpack.c.l.b16 %v1494
        %v1533 = vunpack.c.l.b16 %v1495
        %v1534 = vunpack.c.l.b16 %v1496
        %v1535 = vunpack.c.l.b16 %v1497
        %v1536 = vunpack.c.l.b16 %v1498
        %v1537 = vunpack.c.l.b16 %v1499
        %v1538 = vunpack.c.l.b16 %v1500
        %v1539 = vunpack.c.l.b16 %v1501
        %v1540 = vunpack.c.l.b16 %v1502
        %v1541 = vunpack.c.l.b16 %v1503
        %v1542 = vunpack.c.l.b16 %v1504
        %v1543 = vunpack.c.l.b16 %v1505
        %v1544 = vpack.c.b16 %v1529, %v1528
        %v1545 = vpack.c.b16 %v1531, %v1530
        %v1546 = vpack.c.b16 %v1533, %v1532
        %v1547 = vpack.c.b16 %v1535, %v1534
        %v1548 = vpack.c.b16 %v1537, %v1536
        %v1549 = vpack.c.b16 %v1539, %v1538
        %v1550 = vpack.c.b16 %v1541, %v1540
        %v1551 = vpack.c.b16 %v1543, %v1542
        %1560 = vmatpush.bf16.msra.mxu0 %v1551
        %1561 = vmatpush.bf16.msra.mxu0 %v1550
        %1562 = vmatpush.bf16.msra.mxu0 %v1549
        %1563 = vmatpush.bf16.msra.mxu0 %v1548
        %1564 = vmatpush.bf16.msra.mxu0 %v1547
        %1565 = vmatpush.bf16.msra.mxu0 %v1546
        %1566 = vmatpush.bf16.msra.mxu0 %v1545
        %1567 = vmatpush.bf16.msra.mxu0 %v1544
        %1568 = vmatmul.bf16.gmra.mxu0 %v926
        %v1569 = vpop.f32.mrf.mxu0
        %v1570 = vadd.f32 0.0, %v1569
        %v1571 = vpop.f32.mrf.mxu0
        %v1572 = vadd.f32 0.0, %v1571
        %1573 = vmatmul.bf16.gmra.mxu0 %v927
        %v1574 = vpop.f32.mrf.mxu0
        %v1575 = vadd.f32 0.0, %v1574
        %v1576 = vpop.f32.mrf.mxu0
        %v1577 = vadd.f32 0.0, %v1576
        %1578 = vmatmul.bf16.gmra.mxu0 %v928
        %v1579 = vpop.f32.mrf.mxu0
        %v1580 = vadd.f32 0.0, %v1579
        %v1581 = vpop.f32.mrf.mxu0
        %v1582 = vadd.f32 0.0, %v1581
        %1583 = vmatmul.bf16.gmra.mxu0 %v929
        %v1584 = vpop.f32.mrf.mxu0
        %v1585 = vadd.f32 0.0, %v1584
        %v1586 = vpop.f32.mrf.mxu0
        %v1587 = vadd.f32 0.0, %v1586
        %1588 = vmatmul.bf16.gmra.mxu0 %v930
        %v1589 = vpop.f32.mrf.mxu0
        %v1590 = vadd.f32 0.0, %v1589
        %v1591 = vpop.f32.mrf.mxu0
        %v1592 = vadd.f32 0.0, %v1591
        %1593 = vmatmul.bf16.gmra.mxu0 %v931
        %v1594 = vpop.f32.mrf.mxu0
        %v1595 = vadd.f32 0.0, %v1594
        %v1596 = vpop.f32.mrf.mxu0
        %v1597 = vadd.f32 0.0, %v1596
        %1598 = vmatmul.bf16.gmra.mxu0 %v932
        %v1599 = vpop.f32.mrf.mxu0
        %v1600 = vadd.f32 0.0, %v1599
        %v1601 = vpop.f32.mrf.mxu0
        %v1602 = vadd.f32 0.0, %v1601
        %1603 = vmatmul.bf16.gmra.mxu0 %v933
        %v1604 = vpop.f32.mrf.mxu0
        %v1605 = vadd.f32 0.0, %v1604
        %v1606 = vpop.f32.mrf.mxu0
        %v1607 = vadd.f32 0.0, %v1606
        %1608 = vmatmul.bf16.gmra.mxu0 %v934
        %v1609 = vpop.f32.mrf.mxu0
        %v1610 = vadd.f32 0.0, %v1609
        %v1611 = vpop.f32.mrf.mxu0
        %v1612 = vadd.f32 0.0, %v1611
        %1613 = vmatmul.bf16.gmra.mxu0 %v935
        %v1614 = vpop.f32.mrf.mxu0
        %v1615 = vadd.f32 0.0, %v1614
        %v1616 = vpop.f32.mrf.mxu0
        %v1617 = vadd.f32 0.0, %v1616
        %1618 = vmatmul.bf16.gmra.mxu0 %v936
        %v1619 = vpop.f32.mrf.mxu0
        %v1620 = vadd.f32 0.0, %v1619
        %v1621 = vpop.f32.mrf.mxu0
        %v1622 = vadd.f32 0.0, %v1621
        %1623 = vmatmul.bf16.gmra.mxu0 %v937
        %v1624 = vpop.f32.mrf.mxu0
        %v1625 = vadd.f32 0.0, %v1624
        %v1626 = vpop.f32.mrf.mxu0
        %v1627 = vadd.f32 0.0, %v1626
        %1628 = vmatmul.bf16.gmra.mxu0 %v938
        %v1629 = vpop.f32.mrf.mxu0
        %v1630 = vadd.f32 0.0, %v1629
        %v1631 = vpop.f32.mrf.mxu0
        %v1632 = vadd.f32 0.0, %v1631
        %1633 = vmatmul.bf16.gmra.mxu0 %v939
        %v1634 = vpop.f32.mrf.mxu0
        %v1635 = vadd.f32 0.0, %v1634
        %v1636 = vpop.f32.mrf.mxu0
        %v1637 = vadd.f32 0.0, %v1636
        %1638 = vmatmul.bf16.gmra.mxu0 %v940
        %v1639 = vpop.f32.mrf.mxu0
        %v1640 = vadd.f32 0.0, %v1639
        %v1641 = vpop.f32.mrf.mxu0
        %v1642 = vadd.f32 0.0, %v1641
        %1643 = vmatmul.bf16.gmra.mxu0 %v1510
        %v1644 = vpop.f32.mrf.mxu0
        %v1645 = vadd.f32 0.0, %v1644
        %v1646 = vpop.f32.mrf.mxu0
        %v1647 = vadd.f32 0.0, %v1646
        %1648 = vdwg.mxu0
        %v1649 = vadd.f32 %v1458, %v1570
        %v1650 = vadd.f32 %v1459, %v1572
        %v1651 = vadd.f32 %v1460, %v1575
        %v1652 = vadd.f32 %v1461, %v1577
        %v1653 = vadd.f32 %v1462, %v1580
        %v1654 = vadd.f32 %v1463, %v1582
        %v1655 = vadd.f32 %v1464, %v1585
        %v1656 = vadd.f32 %v1465, %v1587
        %v1657 = vadd.f32 %v1466, %v1590
        %v1658 = vadd.f32 %v1467, %v1592
        %v1659 = vadd.f32 %v1468, %v1595
        %v1660 = vadd.f32 %v1469, %v1597
        %v1661 = vadd.f32 %v1470, %v1600
        %v1662 = vadd.f32 %v1471, %v1602
        %v1663 = vadd.f32 %v1472, %v1605
        %v1664 = vadd.f32 %v1473, %v1607
        %v1665 = vadd.f32 %v1474, %v1610
        %v1666 = vadd.f32 %v1475, %v1612
        %v1667 = vadd.f32 %v1476, %v1615
        %v1668 = vadd.f32 %v1477, %v1617
        %v1669 = vadd.f32 %v1478, %v1620
        %v1670 = vadd.f32 %v1479, %v1622
        %v1671 = vadd.f32 %v1480, %v1625
        %v1672 = vadd.f32 %v1481, %v1627
        %v1673 = vadd.f32 %v1482, %v1630
        %v1674 = vadd.f32 %v1483, %v1632
        %v1675 = vadd.f32 %v1484, %v1635
        %v1676 = vadd.f32 %v1485, %v1637
        %v1677 = vadd.f32 %v1486, %v1640
        %v1678 = vadd.f32 %v1487, %v1642
        %v1679 = vadd.f32 %v1488, %v1645
        %v1680 = vadd.f32 %v1489, %v1647
        %v1682 = vshrl.u32 %v201, 16
        %v1684 = vrot.slane %v1682, 4
        %v1685 = vshll.u32 %v201, 16
        %v1687 = vrot.slane %v1685, 5
        %v1688 = vor.u32 %v1684, %v1687
        %v1689 = vrot.slane %v1688, 4
        %v1691 = vshll.u32 %v202, 16
        %v1693 = vrot.slane %v1691, 5
        %v1694 = vsel %vm259, %v1689, %v1693
        %v1695 = vshrl.u32 %v202, 16
        %v1697 = vrot.slane %v1695, 4
        %v1698 = vor.u32 %v1697, %v1693
        %v1699 = vrot.slane %v1698, 4
        %v1701 = vshll.u32 %v221, 16
        %v1703 = vrot.slane %v1701, 5
        %v1704 = vsel %vm259, %v1699, %v1703
        %v1705 = vld [vmem:[%s1 + $0x100] sm:$0xf]
        %v1706 = vld [vmem:[%s1 + $0x104] sm:$0xf]
        %v1707 = vld [vmem:[%s1 + $0x108] sm:$0xf]
        %v1708 = vld [vmem:[%s1 + $0x10c] sm:$0xf]
        %v1709 = vld [vmem:[%s1 + $0x110] sm:$0xf]
        %v1710 = vld [vmem:[%s1 + $0x114] sm:$0xf]
        %v1711 = vld [vmem:[%s1 + $0x118] sm:$0xf]
        %v1712 = vld [vmem:[%s1 + $0x11c] sm:$0xf]
        %v1713 = vld [vmem:[%s1 + $0x120] sm:$0xf]
        %v1714 = vld [vmem:[%s1 + $0x124] sm:$0xf]
        %v1715 = vld [vmem:[%s1 + $0x128] sm:$0xf]
        %v1716 = vld [vmem:[%s1 + $0x12c] sm:$0xf]
        %v1717 = vld [vmem:[%s1 + $0x130] sm:$0xf]
        %v1718 = vld [vmem:[%s1 + $0x134] sm:$0xf]
        %v1719 = vld [vmem:[%s1 + $0x138] sm:$0xf]
        %v1720 = vld [vmem:[%s1 + $0x13c] sm:$0xf]
        %v1721 = vunpack.c.l.b16 %v1694
        %v1722 = vunpack.c.l.b16 %v1704
        %v1723 = vpack.c.b16 %v1722, %v1721
        %v1741 = vunpack.c.l.b16 %v1705
        %v1742 = vunpack.c.l.b16 %v1706
        %v1743 = vunpack.c.l.b16 %v1707
        %v1744 = vunpack.c.l.b16 %v1708
        %v1745 = vunpack.c.l.b16 %v1709
        %v1746 = vunpack.c.l.b16 %v1710
        %v1747 = vunpack.c.l.b16 %v1711
        %v1748 = vunpack.c.l.b16 %v1712
        %v1749 = vunpack.c.l.b16 %v1713
        %v1750 = vunpack.c.l.b16 %v1714
        %v1751 = vunpack.c.l.b16 %v1715
        %v1752 = vunpack.c.l.b16 %v1716
        %v1753 = vunpack.c.l.b16 %v1717
        %v1754 = vunpack.c.l.b16 %v1718
        %v1755 = vunpack.c.l.b16 %v1719
        %v1756 = vunpack.c.l.b16 %v1720
        %v1757 = vpack.c.b16 %v1742, %v1741
        %v1758 = vpack.c.b16 %v1744, %v1743
        %v1759 = vpack.c.b16 %v1746, %v1745
        %v1760 = vpack.c.b16 %v1748, %v1747
        %v1761 = vpack.c.b16 %v1750, %v1749
        %v1762 = vpack.c.b16 %v1752, %v1751
        %v1763 = vpack.c.b16 %v1754, %v1753
        %v1764 = vpack.c.b16 %v1756, %v1755
        %1773 = vmatpush.bf16.msra.mxu0 %v1764
        %1774 = vmatpush.bf16.msra.mxu0 %v1763
        %1775 = vmatpush.bf16.msra.mxu0 %v1762
        %1776 = vmatpush.bf16.msra.mxu0 %v1761
        %1777 = vmatpush.bf16.msra.mxu0 %v1760
        %1778 = vmatpush.bf16.msra.mxu0 %v1759
        %1779 = vmatpush.bf16.msra.mxu0 %v1758
        %1780 = vmatpush.bf16.msra.mxu0 %v1757
        %1781 = vmatmul.bf16.gmra.mxu0 %v693
        %v1782 = vpop.f32.mrf.mxu0
        %v1783 = vadd.f32 0.0, %v1782
        %v1784 = vpop.f32.mrf.mxu0
        %v1785 = vadd.f32 0.0, %v1784
        %1786 = vmatmul.bf16.gmra.mxu0 %v694
        %v1787 = vpop.f32.mrf.mxu0
        %v1788 = vadd.f32 0.0, %v1787
        %v1789 = vpop.f32.mrf.mxu0
        %v1790 = vadd.f32 0.0, %v1789
        %1791 = vmatmul.bf16.gmra.mxu0 %v695
        %v1792 = vpop.f32.mrf.mxu0
        %v1793 = vadd.f32 0.0, %v1792
        %v1794 = vpop.f32.mrf.mxu0
        %v1795 = vadd.f32 0.0, %v1794
        %1796 = vmatmul.bf16.gmra.mxu0 %v696
        %v1797 = vpop.f32.mrf.mxu0
        %v1798 = vadd.f32 0.0, %v1797
        %v1799 = vpop.f32.mrf.mxu0
        %v1800 = vadd.f32 0.0, %v1799
        %1801 = vmatmul.bf16.gmra.mxu0 %v697
        %v1802 = vpop.f32.mrf.mxu0
        %v1803 = vadd.f32 0.0, %v1802
        %v1804 = vpop.f32.mrf.mxu0
        %v1805 = vadd.f32 0.0, %v1804
        %1806 = vmatmul.bf16.gmra.mxu0 %v698
        %v1807 = vpop.f32.mrf.mxu0
        %v1808 = vadd.f32 0.0, %v1807
        %v1809 = vpop.f32.mrf.mxu0
        %v1810 = vadd.f32 0.0, %v1809
        %1811 = vmatmul.bf16.gmra.mxu0 %v699
        %v1812 = vpop.f32.mrf.mxu0
        %v1813 = vadd.f32 0.0, %v1812
        %v1814 = vpop.f32.mrf.mxu0
        %v1815 = vadd.f32 0.0, %v1814
        %1816 = vmatmul.bf16.gmra.mxu0 %v700
        %v1817 = vpop.f32.mrf.mxu0
        %v1818 = vadd.f32 0.0, %v1817
        %v1819 = vpop.f32.mrf.mxu0
        %v1820 = vadd.f32 0.0, %v1819
        %1821 = vmatmul.bf16.gmra.mxu0 %v701
        %v1822 = vpop.f32.mrf.mxu0
        %v1823 = vadd.f32 0.0, %v1822
        %v1824 = vpop.f32.mrf.mxu0
        %v1825 = vadd.f32 0.0, %v1824
        %1826 = vmatmul.bf16.gmra.mxu0 %v702
        %v1827 = vpop.f32.mrf.mxu0
        %v1828 = vadd.f32 0.0, %v1827
        %v1829 = vpop.f32.mrf.mxu0
        %v1830 = vadd.f32 0.0, %v1829
        %1831 = vmatmul.bf16.gmra.mxu0 %v703
        %v1832 = vpop.f32.mrf.mxu0
        %v1833 = vadd.f32 0.0, %v1832
        %v1834 = vpop.f32.mrf.mxu0
        %v1835 = vadd.f32 0.0, %v1834
        %1836 = vmatmul.bf16.gmra.mxu0 %v704
        %v1837 = vpop.f32.mrf.mxu0
        %v1838 = vadd.f32 0.0, %v1837
        %v1839 = vpop.f32.mrf.mxu0
        %v1840 = vadd.f32 0.0, %v1839
        %1841 = vmatmul.bf16.gmra.mxu0 %v705
        %v1842 = vpop.f32.mrf.mxu0
        %v1843 = vadd.f32 0.0, %v1842
        %v1844 = vpop.f32.mrf.mxu0
        %v1845 = vadd.f32 0.0, %v1844
        %1846 = vmatmul.bf16.gmra.mxu0 %v706
        %v1847 = vpop.f32.mrf.mxu0
        %v1848 = vadd.f32 0.0, %v1847
        %v1849 = vpop.f32.mrf.mxu0
        %v1850 = vadd.f32 0.0, %v1849
        %1851 = vmatmul.bf16.gmra.mxu0 %v707
        %v1852 = vpop.f32.mrf.mxu0
        %v1853 = vadd.f32 0.0, %v1852
        %v1854 = vpop.f32.mrf.mxu0
        %v1855 = vadd.f32 0.0, %v1854
        %1856 = vmatmul.bf16.gmra.mxu0 %v1723
        %v1857 = vpop.f32.mrf.mxu0
        %v1858 = vadd.f32 0.0, %v1857
        %v1859 = vpop.f32.mrf.mxu0
        %v1860 = vadd.f32 0.0, %v1859
        %1861 = vdwg.mxu0
        %v1862 = vadd.f32 %v1649, %v1783
        %v1863 = vadd.f32 %v1650, %v1785
        %v1864 = vadd.f32 %v1651, %v1788
        %v1865 = vadd.f32 %v1652, %v1790
        %v1866 = vadd.f32 %v1653, %v1793
        %v1867 = vadd.f32 %v1654, %v1795
        %v1868 = vadd.f32 %v1655, %v1798
        %v1869 = vadd.f32 %v1656, %v1800
        %v1870 = vadd.f32 %v1657, %v1803
        %v1871 = vadd.f32 %v1658, %v1805
        %v1872 = vadd.f32 %v1659, %v1808
        %v1873 = vadd.f32 %v1660, %v1810
        %v1874 = vadd.f32 %v1661, %v1813
        %v1875 = vadd.f32 %v1662, %v1815
        %v1876 = vadd.f32 %v1663, %v1818
        %v1877 = vadd.f32 %v1664, %v1820
        %v1878 = vadd.f32 %v1665, %v1823
        %v1879 = vadd.f32 %v1666, %v1825
        %v1880 = vadd.f32 %v1667, %v1828
        %v1881 = vadd.f32 %v1668, %v1830
        %v1882 = vadd.f32 %v1669, %v1833
        %v1883 = vadd.f32 %v1670, %v1835
        %v1884 = vadd.f32 %v1671, %v1838
        %v1885 = vadd.f32 %v1672, %v1840
        %v1886 = vadd.f32 %v1673, %v1843
        %v1887 = vadd.f32 %v1674, %v1845
        %v1888 = vadd.f32 %v1675, %v1848
        %v1889 = vadd.f32 %v1676, %v1850
        %v1890 = vadd.f32 %v1677, %v1853
        %v1891 = vadd.f32 %v1678, %v1855
        %v1892 = vadd.f32 %v1679, %v1858
        %v1893 = vadd.f32 %v1680, %v1860
        %v1896 = vrot.slane %v239, 5
        %v1897 = vrot.slane %v1896, 4
        %v1898 = vrot.slane %v202, 5
        %v1899 = vsel %vm1128, %v1897, %v1898
        %v1900 = vrot.slane %v1898, 4
        %v1901 = vrot.slane %v221, 5
        %v1902 = vsel %vm1128, %v1900, %v1901
        %v1903 = vld [vmem:[%s1 + $0x140] sm:$0xf]
        %v1904 = vld [vmem:[%s1 + $0x144] sm:$0xf]
        %v1905 = vld [vmem:[%s1 + $0x148] sm:$0xf]
        %v1906 = vld [vmem:[%s1 + $0x14c] sm:$0xf]
        %v1907 = vld [vmem:[%s1 + $0x150] sm:$0xf]
        %v1908 = vld [vmem:[%s1 + $0x154] sm:$0xf]
        %v1909 = vld [vmem:[%s1 + $0x158] sm:$0xf]
        %v1910 = vld [vmem:[%s1 + $0x15c] sm:$0xf]
        %v1911 = vld [vmem:[%s1 + $0x160] sm:$0xf]
        %v1912 = vld [vmem:[%s1 + $0x164] sm:$0xf]
        %v1913 = vld [vmem:[%s1 + $0x168] sm:$0xf]
        %v1914 = vld [vmem:[%s1 + $0x16c] sm:$0xf]
        %v1915 = vld [vmem:[%s1 + $0x170] sm:$0xf]
        %v1916 = vld [vmem:[%s1 + $0x174] sm:$0xf]
        %v1917 = vld [vmem:[%s1 + $0x178] sm:$0xf]
        %v1918 = vld [vmem:[%s1 + $0x17c] sm:$0xf]
        %v1919 = vunpack.c.l.b16 %v1899
        %v1920 = vunpack.c.l.b16 %v1902
        %v1921 = vpack.c.b16 %v1920, %v1919
        %v1939 = vunpack.c.l.b16 %v1903
        %v1940 = vunpack.c.l.b16 %v1904
        %v1941 = vunpack.c.l.b16 %v1905
        %v1942 = vunpack.c.l.b16 %v1906
        %v1943 = vunpack.c.l.b16 %v1907
        %v1944 = vunpack.c.l.b16 %v1908
        %v1945 = vunpack.c.l.b16 %v1909
        %v1946 = vunpack.c.l.b16 %v1910
        %v1947 = vunpack.c.l.b16 %v1911
        %v1948 = vunpack.c.l.b16 %v1912
        %v1949 = vunpack.c.l.b16 %v1913
        %v1950 = vunpack.c.l.b16 %v1914
        %v1951 = vunpack.c.l.b16 %v1915
        %v1952 = vunpack.c.l.b16 %v1916
        %v1953 = vunpack.c.l.b16 %v1917
        %v1954 = vunpack.c.l.b16 %v1918
        %v1955 = vpack.c.b16 %v1940, %v1939
        %v1956 = vpack.c.b16 %v1942, %v1941
        %v1957 = vpack.c.b16 %v1944, %v1943
        %v1958 = vpack.c.b16 %v1946, %v1945
        %v1959 = vpack.c.b16 %v1948, %v1947
        %v1960 = vpack.c.b16 %v1950, %v1949
        %v1961 = vpack.c.b16 %v1952, %v1951
        %v1962 = vpack.c.b16 %v1954, %v1953
        %1971 = vmatpush.bf16.msra.mxu0 %v1962
        %1972 = vmatpush.bf16.msra.mxu0 %v1961
        %1973 = vmatpush.bf16.msra.mxu0 %v1960
        %1974 = vmatpush.bf16.msra.mxu0 %v1959
        %1975 = vmatpush.bf16.msra.mxu0 %v1958
        %1976 = vmatpush.bf16.msra.mxu0 %v1957
        %1977 = vmatpush.bf16.msra.mxu0 %v1956
        %1978 = vmatpush.bf16.msra.mxu0 %v1955
        %1979 = vmatmul.bf16.gmra.mxu0 %v1290
        %v1980 = vpop.f32.mrf.mxu0
        %v1981 = vadd.f32 0.0, %v1980
        %v1982 = vpop.f32.mrf.mxu0
        %v1983 = vadd.f32 0.0, %v1982
        %1984 = vmatmul.bf16.gmra.mxu0 %v1291
        %v1985 = vpop.f32.mrf.mxu0
        %v1986 = vadd.f32 0.0, %v1985
        %v1987 = vpop.f32.mrf.mxu0
        %v1988 = vadd.f32 0.0, %v1987
        %1989 = vmatmul.bf16.gmra.mxu0 %v1292
        %v1990 = vpop.f32.mrf.mxu0
        %v1991 = vadd.f32 0.0, %v1990
        %v1992 = vpop.f32.mrf.mxu0
        %v1993 = vadd.f32 0.0, %v1992
        %1994 = vmatmul.bf16.gmra.mxu0 %v1293
        %v1995 = vpop.f32.mrf.mxu0
        %v1996 = vadd.f32 0.0, %v1995
        %v1997 = vpop.f32.mrf.mxu0
        %v1998 = vadd.f32 0.0, %v1997
        %1999 = vmatmul.bf16.gmra.mxu0 %v1294
        %v2000 = vpop.f32.mrf.mxu0
        %v2001 = vadd.f32 0.0, %v2000
        %v2002 = vpop.f32.mrf.mxu0
        %v2003 = vadd.f32 0.0, %v2002
        %2004 = vmatmul.bf16.gmra.mxu0 %v1295
        %v2005 = vpop.f32.mrf.mxu0
        %v2006 = vadd.f32 0.0, %v2005
        %v2007 = vpop.f32.mrf.mxu0
        %v2008 = vadd.f32 0.0, %v2007
        %2009 = vmatmul.bf16.gmra.mxu0 %v1296
        %v2010 = vpop.f32.mrf.mxu0
        %v2011 = vadd.f32 0.0, %v2010
        %v2012 = vpop.f32.mrf.mxu0
        %v2013 = vadd.f32 0.0, %v2012
        %2014 = vmatmul.bf16.gmra.mxu0 %v1297
        %v2015 = vpop.f32.mrf.mxu0
        %v2016 = vadd.f32 0.0, %v2015
        %v2017 = vpop.f32.mrf.mxu0
        %v2018 = vadd.f32 0.0, %v2017
        %2019 = vmatmul.bf16.gmra.mxu0 %v1298
        %v2020 = vpop.f32.mrf.mxu0
        %v2021 = vadd.f32 0.0, %v2020
        %v2022 = vpop.f32.mrf.mxu0
        %v2023 = vadd.f32 0.0, %v2022
        %2024 = vmatmul.bf16.gmra.mxu0 %v1299
        %v2025 = vpop.f32.mrf.mxu0
        %v2026 = vadd.f32 0.0, %v2025
        %v2027 = vpop.f32.mrf.mxu0
        %v2028 = vadd.f32 0.0, %v2027
        %2029 = vmatmul.bf16.gmra.mxu0 %v1300
        %v2030 = vpop.f32.mrf.mxu0
        %v2031 = vadd.f32 0.0, %v2030
        %v2032 = vpop.f32.mrf.mxu0
        %v2033 = vadd.f32 0.0, %v2032
        %2034 = vmatmul.bf16.gmra.mxu0 %v1301
        %v2035 = vpop.f32.mrf.mxu0
        %v2036 = vadd.f32 0.0, %v2035
        %v2037 = vpop.f32.mrf.mxu0
        %v2038 = vadd.f32 0.0, %v2037
        %2039 = vmatmul.bf16.gmra.mxu0 %v1302
        %v2040 = vpop.f32.mrf.mxu0
        %v2041 = vadd.f32 0.0, %v2040
        %v2042 = vpop.f32.mrf.mxu0
        %v2043 = vadd.f32 0.0, %v2042
        %2044 = vmatmul.bf16.gmra.mxu0 %v1303
        %v2045 = vpop.f32.mrf.mxu0
        %v2046 = vadd.f32 0.0, %v2045
        %v2047 = vpop.f32.mrf.mxu0
        %v2048 = vadd.f32 0.0, %v2047
        %2049 = vmatmul.bf16.gmra.mxu0 %v1304
        %v2050 = vpop.f32.mrf.mxu0
        %v2051 = vadd.f32 0.0, %v2050
        %v2052 = vpop.f32.mrf.mxu0
        %v2053 = vadd.f32 0.0, %v2052
        %2054 = vmatmul.bf16.gmra.mxu0 %v1921
        %v2055 = vpop.f32.mrf.mxu0
        %v2056 = vadd.f32 0.0, %v2055
        %v2057 = vpop.f32.mrf.mxu0
        %v2058 = vadd.f32 0.0, %v2057
        %2059 = vdwg.mxu0
        %v2060 = vadd.f32 %v1862, %v1981
        %v2061 = vadd.f32 %v1863, %v1983
        %v2062 = vadd.f32 %v1864, %v1986
        %v2063 = vadd.f32 %v1865, %v1988
        %v2064 = vadd.f32 %v1866, %v1991
        %v2065 = vadd.f32 %v1867, %v1993
        %v2066 = vadd.f32 %v1868, %v1996
        %v2067 = vadd.f32 %v1869, %v1998
        %v2068 = vadd.f32 %v1870, %v2001
        %v2069 = vadd.f32 %v1871, %v2003
        %v2070 = vadd.f32 %v1872, %v2006
        %v2071 = vadd.f32 %v1873, %v2008
        %v2072 = vadd.f32 %v1874, %v2011
        %v2073 = vadd.f32 %v1875, %v2013
        %v2074 = vadd.f32 %v1876, %v2016
        %v2075 = vadd.f32 %v1877, %v2018
        %v2076 = vadd.f32 %v1878, %v2021
        %v2077 = vadd.f32 %v1879, %v2023
        %v2078 = vadd.f32 %v1880, %v2026
        %v2079 = vadd.f32 %v1881, %v2028
        %v2080 = vadd.f32 %v1882, %v2031
        %v2081 = vadd.f32 %v1883, %v2033
        %v2082 = vadd.f32 %v1884, %v2036
        %v2083 = vadd.f32 %v1885, %v2038
        %v2084 = vadd.f32 %v1886, %v2041
        %v2085 = vadd.f32 %v1887, %v2043
        %v2086 = vadd.f32 %v1888, %v2046
        %v2087 = vadd.f32 %v1889, %v2048
        %v2088 = vadd.f32 %v1890, %v2051
        %v2089 = vadd.f32 %v1891, %v2053
        %v2090 = vadd.f32 %v1892, %v2056
        %v2091 = vadd.f32 %v1893, %v2058
        %v2092 = vld [vmem:[%s1 + $0x180] sm:$0xf]
        %v2093 = vld [vmem:[%s1 + $0x184] sm:$0xf]
        %v2094 = vld [vmem:[%s1 + $0x188] sm:$0xf]
        %v2095 = vld [vmem:[%s1 + $0x18c] sm:$0xf]
        %v2096 = vld [vmem:[%s1 + $0x190] sm:$0xf]
        %v2097 = vld [vmem:[%s1 + $0x194] sm:$0xf]
        %v2098 = vld [vmem:[%s1 + $0x198] sm:$0xf]
        %v2099 = vld [vmem:[%s1 + $0x19c] sm:$0xf]
        %v2100 = vld [vmem:[%s1 + $0x1a0] sm:$0xf]
        %v2101 = vld [vmem:[%s1 + $0x1a4] sm:$0xf]
        %v2102 = vld [vmem:[%s1 + $0x1a8] sm:$0xf]
        %v2103 = vld [vmem:[%s1 + $0x1ac] sm:$0xf]
        %v2104 = vld [vmem:[%s1 + $0x1b0] sm:$0xf]
        %v2105 = vld [vmem:[%s1 + $0x1b4] sm:$0xf]
        %v2106 = vld [vmem:[%s1 + $0x1b8] sm:$0xf]
        %v2107 = vld [vmem:[%s1 + $0x1bc] sm:$0xf]
        %v2110 = vunpack.c.l.b16 %v203
        %v2111 = vunpack.c.l.b16 %v204
        %v2112 = vpack.c.b16 %v2111, %v2110
        %v2130 = vunpack.c.l.b16 %v2092
        %v2131 = vunpack.c.l.b16 %v2093
        %v2132 = vunpack.c.l.b16 %v2094
        %v2133 = vunpack.c.l.b16 %v2095
        %v2134 = vunpack.c.l.b16 %v2096
        %v2135 = vunpack.c.l.b16 %v2097
        %v2136 = vunpack.c.l.b16 %v2098
        %v2137 = vunpack.c.l.b16 %v2099
        %v2138 = vunpack.c.l.b16 %v2100
        %v2139 = vunpack.c.l.b16 %v2101
        %v2140 = vunpack.c.l.b16 %v2102
        %v2141 = vunpack.c.l.b16 %v2103
        %v2142 = vunpack.c.l.b16 %v2104
        %v2143 = vunpack.c.l.b16 %v2105
        %v2144 = vunpack.c.l.b16 %v2106
        %v2145 = vunpack.c.l.b16 %v2107
        %v2146 = vpack.c.b16 %v2131, %v2130
        %v2147 = vpack.c.b16 %v2133, %v2132
        %v2148 = vpack.c.b16 %v2135, %v2134
        %v2149 = vpack.c.b16 %v2137, %v2136
        %v2150 = vpack.c.b16 %v2139, %v2138
        %v2151 = vpack.c.b16 %v2141, %v2140
        %v2152 = vpack.c.b16 %v2143, %v2142
        %v2153 = vpack.c.b16 %v2145, %v2144
        %2162 = vmatpush.bf16.msra.mxu0 %v2153
        %2163 = vmatpush.bf16.msra.mxu0 %v2152
        %2164 = vmatpush.bf16.msra.mxu0 %v2151
        %2165 = vmatpush.bf16.msra.mxu0 %v2150
        %2166 = vmatpush.bf16.msra.mxu0 %v2149
        %2167 = vmatpush.bf16.msra.mxu0 %v2148
        %2168 = vmatpush.bf16.msra.mxu0 %v2147
        %2169 = vmatpush.bf16.msra.mxu0 %v2146
        %2170 = vmatmul.bf16.gmra.mxu0 %v927
        %v2171 = vpop.f32.mrf.mxu0
        %v2172 = vadd.f32 0.0, %v2171
        %v2173 = vpop.f32.mrf.mxu0
        %v2174 = vadd.f32 0.0, %v2173
        %2175 = vmatmul.bf16.gmra.mxu0 %v928
        %v2176 = vpop.f32.mrf.mxu0
        %v2177 = vadd.f32 0.0, %v2176
        %v2178 = vpop.f32.mrf.mxu0
        %v2179 = vadd.f32 0.0, %v2178
        %2180 = vmatmul.bf16.gmra.mxu0 %v929
        %v2181 = vpop.f32.mrf.mxu0
        %v2182 = vadd.f32 0.0, %v2181
        %v2183 = vpop.f32.mrf.mxu0
        %v2184 = vadd.f32 0.0, %v2183
        %2185 = vmatmul.bf16.gmra.mxu0 %v930
        %v2186 = vpop.f32.mrf.mxu0
        %v2187 = vadd.f32 0.0, %v2186
        %v2188 = vpop.f32.mrf.mxu0
        %v2189 = vadd.f32 0.0, %v2188
        %2190 = vmatmul.bf16.gmra.mxu0 %v931
        %v2191 = vpop.f32.mrf.mxu0
        %v2192 = vadd.f32 0.0, %v2191
        %v2193 = vpop.f32.mrf.mxu0
        %v2194 = vadd.f32 0.0, %v2193
        %2195 = vmatmul.bf16.gmra.mxu0 %v932
        %v2196 = vpop.f32.mrf.mxu0
        %v2197 = vadd.f32 0.0, %v2196
        %v2198 = vpop.f32.mrf.mxu0
        %v2199 = vadd.f32 0.0, %v2198
        %2200 = vmatmul.bf16.gmra.mxu0 %v933
        %v2201 = vpop.f32.mrf.mxu0
        %v2202 = vadd.f32 0.0, %v2201
        %v2203 = vpop.f32.mrf.mxu0
        %v2204 = vadd.f32 0.0, %v2203
        %2205 = vmatmul.bf16.gmra.mxu0 %v934
        %v2206 = vpop.f32.mrf.mxu0
        %v2207 = vadd.f32 0.0, %v2206
        %v2208 = vpop.f32.mrf.mxu0
        %v2209 = vadd.f32 0.0, %v2208
        %2210 = vmatmul.bf16.gmra.mxu0 %v935
        %v2211 = vpop.f32.mrf.mxu0
        %v2212 = vadd.f32 0.0, %v2211
        %v2213 = vpop.f32.mrf.mxu0
        %v2214 = vadd.f32 0.0, %v2213
        %2215 = vmatmul.bf16.gmra.mxu0 %v936
        %v2216 = vpop.f32.mrf.mxu0
        %v2217 = vadd.f32 0.0, %v2216
        %v2218 = vpop.f32.mrf.mxu0
        %v2219 = vadd.f32 0.0, %v2218
        %2220 = vmatmul.bf16.gmra.mxu0 %v937
        %v2221 = vpop.f32.mrf.mxu0
        %v2222 = vadd.f32 0.0, %v2221
        %v2223 = vpop.f32.mrf.mxu0
        %v2224 = vadd.f32 0.0, %v2223
        %2225 = vmatmul.bf16.gmra.mxu0 %v938
        %v2226 = vpop.f32.mrf.mxu0
        %v2227 = vadd.f32 0.0, %v2226
        %v2228 = vpop.f32.mrf.mxu0
        %v2229 = vadd.f32 0.0, %v2228
        %2230 = vmatmul.bf16.gmra.mxu0 %v939
        %v2231 = vpop.f32.mrf.mxu0
        %v2232 = vadd.f32 0.0, %v2231
        %v2233 = vpop.f32.mrf.mxu0
        %v2234 = vadd.f32 0.0, %v2233
        %2235 = vmatmul.bf16.gmra.mxu0 %v940
        %v2236 = vpop.f32.mrf.mxu0
        %v2237 = vadd.f32 0.0, %v2236
        %v2238 = vpop.f32.mrf.mxu0
        %v2239 = vadd.f32 0.0, %v2238
        %2240 = vmatmul.bf16.gmra.mxu0 %v1510
        %v2241 = vpop.f32.mrf.mxu0
        %v2242 = vadd.f32 0.0, %v2241
        %v2243 = vpop.f32.mrf.mxu0
        %v2244 = vadd.f32 0.0, %v2243
        %2245 = vmatmul.bf16.gmra.mxu0 %v2112
        %v2246 = vpop.f32.mrf.mxu0
        %v2247 = vadd.f32 0.0, %v2246
        %v2248 = vpop.f32.mrf.mxu0
        %v2249 = vadd.f32 0.0, %v2248
        %2250 = vdwg.mxu0
        %v2251 = vadd.f32 %v2060, %v2172
        %v2252 = vadd.f32 %v2061, %v2174
        %v2253 = vadd.f32 %v2062, %v2177
        %v2254 = vadd.f32 %v2063, %v2179
        %v2255 = vadd.f32 %v2064, %v2182
        %v2256 = vadd.f32 %v2065, %v2184
        %v2257 = vadd.f32 %v2066, %v2187
        %v2258 = vadd.f32 %v2067, %v2189
        %v2259 = vadd.f32 %v2068, %v2192
        %v2260 = vadd.f32 %v2069, %v2194
        %v2261 = vadd.f32 %v2070, %v2197
        %v2262 = vadd.f32 %v2071, %v2199
        %v2263 = vadd.f32 %v2072, %v2202
        %v2264 = vadd.f32 %v2073, %v2204
        %v2265 = vadd.f32 %v2074, %v2207
        %v2266 = vadd.f32 %v2075, %v2209
        %v2267 = vadd.f32 %v2076, %v2212
        %v2268 = vadd.f32 %v2077, %v2214
        %v2269 = vadd.f32 %v2078, %v2217
        %v2270 = vadd.f32 %v2079, %v2219
        %v2271 = vadd.f32 %v2080, %v2222
        %v2272 = vadd.f32 %v2081, %v2224
        %v2273 = vadd.f32 %v2082, %v2227
        %v2274 = vadd.f32 %v2083, %v2229
        %v2275 = vadd.f32 %v2084, %v2232
        %v2276 = vadd.f32 %v2085, %v2234
        %v2277 = vadd.f32 %v2086, %v2237
        %v2278 = vadd.f32 %v2087, %v2239
        %v2279 = vadd.f32 %v2088, %v2242
        %v2280 = vadd.f32 %v2089, %v2244
        %v2281 = vadd.f32 %v2090, %v2247
        %v2282 = vadd.f32 %v2091, %v2249
        %v2284 = vshrl.u32 %v203, 16
        %v2286 = vrot.slane %v2284, 4
        %v2287 = vshll.u32 %v203, 16
        %v2289 = vrot.slane %v2287, 5
        %v2290 = vor.u32 %v2286, %v2289
        %v2291 = vrot.slane %v2290, 4
        %v2293 = vshll.u32 %v204, 16
        %v2295 = vrot.slane %v2293, 5
        %v2296 = vsel %vm259, %v2291, %v2295
        %v2297 = vshrl.u32 %v204, 16
        %v2299 = vrot.slane %v2297, 4
        %v2300 = vor.u32 %v2299, %v2295
        %v2301 = vrot.slane %v2300, 4
        %v2303 = vshll.u32 %v222, 16
        %v2305 = vrot.slane %v2303, 5
        %v2306 = vsel %vm259, %v2301, %v2305
        %v2307 = vld [vmem:[%s1 + $0x1c0] sm:$0xf]
        %v2308 = vld [vmem:[%s1 + $0x1c4] sm:$0xf]
        %v2309 = vld [vmem:[%s1 + $0x1c8] sm:$0xf]
        %v2310 = vld [vmem:[%s1 + $0x1cc] sm:$0xf]
        %v2311 = vld [vmem:[%s1 + $0x1d0] sm:$0xf]
        %v2312 = vld [vmem:[%s1 + $0x1d4] sm:$0xf]
        %v2313 = vld [vmem:[%s1 + $0x1d8] sm:$0xf]
        %v2314 = vld [vmem:[%s1 + $0x1dc] sm:$0xf]
        %v2315 = vld [vmem:[%s1 + $0x1e0] sm:$0xf]
        %v2316 = vld [vmem:[%s1 + $0x1e4] sm:$0xf]
        %v2317 = vld [vmem:[%s1 + $0x1e8] sm:$0xf]
        %v2318 = vld [vmem:[%s1 + $0x1ec] sm:$0xf]
        %v2319 = vld [vmem:[%s1 + $0x1f0] sm:$0xf]
        %v2320 = vld [vmem:[%s1 + $0x1f4] sm:$0xf]
        %v2321 = vld [vmem:[%s1 + $0x1f8] sm:$0xf]
        %v2322 = vld [vmem:[%s1 + $0x1fc] sm:$0xf]
        %v2323 = vunpack.c.l.b16 %v2296
        %v2324 = vunpack.c.l.b16 %v2306
        %v2325 = vpack.c.b16 %v2324, %v2323
        %v2343 = vunpack.c.l.b16 %v2307
        %v2344 = vunpack.c.l.b16 %v2308
        %v2345 = vunpack.c.l.b16 %v2309
        %v2346 = vunpack.c.l.b16 %v2310
        %v2347 = vunpack.c.l.b16 %v2311
        %v2348 = vunpack.c.l.b16 %v2312
        %v2349 = vunpack.c.l.b16 %v2313
        %v2350 = vunpack.c.l.b16 %v2314
        %v2351 = vunpack.c.l.b16 %v2315
        %v2352 = vunpack.c.l.b16 %v2316
        %v2353 = vunpack.c.l.b16 %v2317
        %v2354 = vunpack.c.l.b16 %v2318
        %v2355 = vunpack.c.l.b16 %v2319
        %v2356 = vunpack.c.l.b16 %v2320
        %v2357 = vunpack.c.l.b16 %v2321
        %v2358 = vunpack.c.l.b16 %v2322
        %v2359 = vpack.c.b16 %v2344, %v2343
        %v2360 = vpack.c.b16 %v2346, %v2345
        %v2361 = vpack.c.b16 %v2348, %v2347
        %v2362 = vpack.c.b16 %v2350, %v2349
        %v2363 = vpack.c.b16 %v2352, %v2351
        %v2364 = vpack.c.b16 %v2354, %v2353
        %v2365 = vpack.c.b16 %v2356, %v2355
        %v2366 = vpack.c.b16 %v2358, %v2357
        %2375 = vmatpush.bf16.msra.mxu0 %v2366
        %2376 = vmatpush.bf16.msra.mxu0 %v2365
        %2377 = vmatpush.bf16.msra.mxu0 %v2364
        %2378 = vmatpush.bf16.msra.mxu0 %v2363
        %2379 = vmatpush.bf16.msra.mxu0 %v2362
        %2380 = vmatpush.bf16.msra.mxu0 %v2361
        %2381 = vmatpush.bf16.msra.mxu0 %v2360
        %2382 = vmatpush.bf16.msra.mxu0 %v2359
        %2383 = vmatmul.bf16.gmra.mxu0 %v694
        %v2384 = vpop.f32.mrf.mxu0
        %v2385 = vadd.f32 0.0, %v2384
        %v2386 = vpop.f32.mrf.mxu0
        %v2387 = vadd.f32 0.0, %v2386
        %2388 = vmatmul.bf16.gmra.mxu0 %v695
        %v2389 = vpop.f32.mrf.mxu0
        %v2390 = vadd.f32 0.0, %v2389
        %v2391 = vpop.f32.mrf.mxu0
        %v2392 = vadd.f32 0.0, %v2391
        %2393 = vmatmul.bf16.gmra.mxu0 %v696
        %v2394 = vpop.f32.mrf.mxu0
        %v2395 = vadd.f32 0.0, %v2394
        %v2396 = vpop.f32.mrf.mxu0
        %v2397 = vadd.f32 0.0, %v2396
        %2398 = vmatmul.bf16.gmra.mxu0 %v697
        %v2399 = vpop.f32.mrf.mxu0
        %v2400 = vadd.f32 0.0, %v2399
        %v2401 = vpop.f32.mrf.mxu0
        %v2402 = vadd.f32 0.0, %v2401
        %2403 = vmatmul.bf16.gmra.mxu0 %v698
        %v2404 = vpop.f32.mrf.mxu0
        %v2405 = vadd.f32 0.0, %v2404
        %v2406 = vpop.f32.mrf.mxu0
        %v2407 = vadd.f32 0.0, %v2406
        %2408 = vmatmul.bf16.gmra.mxu0 %v699
        %v2409 = vpop.f32.mrf.mxu0
        %v2410 = vadd.f32 0.0, %v2409
        %v2411 = vpop.f32.mrf.mxu0
        %v2412 = vadd.f32 0.0, %v2411
        %2413 = vmatmul.bf16.gmra.mxu0 %v700
        %v2414 = vpop.f32.mrf.mxu0
        %v2415 = vadd.f32 0.0, %v2414
        %v2416 = vpop.f32.mrf.mxu0
        %v2417 = vadd.f32 0.0, %v2416
        %2418 = vmatmul.bf16.gmra.mxu0 %v701
        %v2419 = vpop.f32.mrf.mxu0
        %v2420 = vadd.f32 0.0, %v2419
        %v2421 = vpop.f32.mrf.mxu0
        %v2422 = vadd.f32 0.0, %v2421
        %2423 = vmatmul.bf16.gmra.mxu0 %v702
        %v2424 = vpop.f32.mrf.mxu0
        %v2425 = vadd.f32 0.0, %v2424
        %v2426 = vpop.f32.mrf.mxu0
        %v2427 = vadd.f32 0.0, %v2426
        %2428 = vmatmul.bf16.gmra.mxu0 %v703
        %v2429 = vpop.f32.mrf.mxu0
        %v2430 = vadd.f32 0.0, %v2429
        %v2431 = vpop.f32.mrf.mxu0
        %v2432 = vadd.f32 0.0, %v2431
        %2433 = vmatmul.bf16.gmra.mxu0 %v704
        %v2434 = vpop.f32.mrf.mxu0
        %v2435 = vadd.f32 0.0, %v2434
        %v2436 = vpop.f32.mrf.mxu0
        %v2437 = vadd.f32 0.0, %v2436
        %2438 = vmatmul.bf16.gmra.mxu0 %v705
        %v2439 = vpop.f32.mrf.mxu0
        %v2440 = vadd.f32 0.0, %v2439
        %v2441 = vpop.f32.mrf.mxu0
        %v2442 = vadd.f32 0.0, %v2441
        %2443 = vmatmul.bf16.gmra.mxu0 %v706
        %v2444 = vpop.f32.mrf.mxu0
        %v2445 = vadd.f32 0.0, %v2444
        %v2446 = vpop.f32.mrf.mxu0
        %v2447 = vadd.f32 0.0, %v2446
        %2448 = vmatmul.bf16.gmra.mxu0 %v707
        %v2449 = vpop.f32.mrf.mxu0
        %v2450 = vadd.f32 0.0, %v2449
        %v2451 = vpop.f32.mrf.mxu0
        %v2452 = vadd.f32 0.0, %v2451
        %2453 = vmatmul.bf16.gmra.mxu0 %v1723
        %v2454 = vpop.f32.mrf.mxu0
        %v2455 = vadd.f32 0.0, %v2454
        %v2456 = vpop.f32.mrf.mxu0
        %v2457 = vadd.f32 0.0, %v2456
        %2458 = vmatmul.bf16.gmra.mxu0 %v2325
        %v2459 = vpop.f32.mrf.mxu0
        %v2460 = vadd.f32 0.0, %v2459
        %v2461 = vpop.f32.mrf.mxu0
        %v2462 = vadd.f32 0.0, %v2461
        %2463 = vdwg.mxu0
        %v2464 = vadd.f32 %v2251, %v2385
        %v2465 = vadd.f32 %v2252, %v2387
        %v2466 = vadd.f32 %v2253, %v2390
        %v2467 = vadd.f32 %v2254, %v2392
        %v2468 = vadd.f32 %v2255, %v2395
        %v2469 = vadd.f32 %v2256, %v2397
        %v2470 = vadd.f32 %v2257, %v2400
        %v2471 = vadd.f32 %v2258, %v2402
        %v2472 = vadd.f32 %v2259, %v2405
        %v2473 = vadd.f32 %v2260, %v2407
        %v2474 = vadd.f32 %v2261, %v2410
        %v2475 = vadd.f32 %v2262, %v2412
        %v2476 = vadd.f32 %v2263, %v2415
        %v2477 = vadd.f32 %v2264, %v2417
        %v2478 = vadd.f32 %v2265, %v2420
        %v2479 = vadd.f32 %v2266, %v2422
        %v2480 = vadd.f32 %v2267, %v2425
        %v2481 = vadd.f32 %v2268, %v2427
        %v2482 = vadd.f32 %v2269, %v2430
        %v2483 = vadd.f32 %v2270, %v2432
        %v2484 = vadd.f32 %v2271, %v2435
        %v2485 = vadd.f32 %v2272, %v2437
        %v2486 = vadd.f32 %v2273, %v2440
        %v2487 = vadd.f32 %v2274, %v2442
        %v2488 = vadd.f32 %v2275, %v2445
        %v2489 = vadd.f32 %v2276, %v2447
        %v2490 = vadd.f32 %v2277, %v2450
        %v2491 = vadd.f32 %v2278, %v2452
        %v2492 = vadd.f32 %v2279, %v2455
        %v2493 = vadd.f32 %v2280, %v2457
        %v2494 = vadd.f32 %v2281, %v2460
        %v2495 = vadd.f32 %v2282, %v2462
        %v2498 = vrot.slane %v240, 5
        %v2499 = vrot.slane %v2498, 4
        %v2500 = vrot.slane %v204, 5
        %v2501 = vsel %vm1128, %v2499, %v2500
        %v2502 = vrot.slane %v2500, 4
        %v2503 = vrot.slane %v222, 5
        %v2504 = vsel %vm1128, %v2502, %v2503
        %v2505 = vld [vmem:[%s1 + $0x200] sm:$0xf]
        %v2506 = vld [vmem:[%s1 + $0x204] sm:$0xf]
        %v2507 = vld [vmem:[%s1 + $0x208] sm:$0xf]
        %v2508 = vld [vmem:[%s1 + $0x20c] sm:$0xf]
        %v2509 = vld [vmem:[%s1 + $0x210] sm:$0xf]
        %v2510 = vld [vmem:[%s1 + $0x214] sm:$0xf]
        %v2511 = vld [vmem:[%s1 + $0x218] sm:$0xf]
        %v2512 = vld [vmem:[%s1 + $0x21c] sm:$0xf]
        %v2513 = vld [vmem:[%s1 + $0x220] sm:$0xf]
        %v2514 = vld [vmem:[%s1 + $0x224] sm:$0xf]
        %v2515 = vld [vmem:[%s1 + $0x228] sm:$0xf]
        %v2516 = vld [vmem:[%s1 + $0x22c] sm:$0xf]
        %v2517 = vld [vmem:[%s1 + $0x230] sm:$0xf]
        %v2518 = vld [vmem:[%s1 + $0x234] sm:$0xf]
        %v2519 = vld [vmem:[%s1 + $0x238] sm:$0xf]
        %v2520 = vld [vmem:[%s1 + $0x23c] sm:$0xf]
        %v2521 = vunpack.c.l.b16 %v2501
        %v2522 = vunpack.c.l.b16 %v2504
        %v2523 = vpack.c.b16 %v2522, %v2521
        %v2541 = vunpack.c.l.b16 %v2505
        %v2542 = vunpack.c.l.b16 %v2506
        %v2543 = vunpack.c.l.b16 %v2507
        %v2544 = vunpack.c.l.b16 %v2508
        %v2545 = vunpack.c.l.b16 %v2509
        %v2546 = vunpack.c.l.b16 %v2510
        %v2547 = vunpack.c.l.b16 %v2511
        %v2548 = vunpack.c.l.b16 %v2512
        %v2549 = vunpack.c.l.b16 %v2513
        %v2550 = vunpack.c.l.b16 %v2514
        %v2551 = vunpack.c.l.b16 %v2515
        %v2552 = vunpack.c.l.b16 %v2516
        %v2553 = vunpack.c.l.b16 %v2517
        %v2554 = vunpack.c.l.b16 %v2518
        %v2555 = vunpack.c.l.b16 %v2519
        %v2556 = vunpack.c.l.b16 %v2520
        %v2557 = vpack.c.b16 %v2542, %v2541
        %v2558 = vpack.c.b16 %v2544, %v2543
        %v2559 = vpack.c.b16 %v2546, %v2545
        %v2560 = vpack.c.b16 %v2548, %v2547
        %v2561 = vpack.c.b16 %v2550, %v2549
        %v2562 = vpack.c.b16 %v2552, %v2551
        %v2563 = vpack.c.b16 %v2554, %v2553
        %v2564 = vpack.c.b16 %v2556, %v2555
        %2573 = vmatpush.bf16.msra.mxu0 %v2564
        %2574 = vmatpush.bf16.msra.mxu0 %v2563
        %2575 = vmatpush.bf16.msra.mxu0 %v2562
        %2576 = vmatpush.bf16.msra.mxu0 %v2561
        %2577 = vmatpush.bf16.msra.mxu0 %v2560
        %2578 = vmatpush.bf16.msra.mxu0 %v2559
        %2579 = vmatpush.bf16.msra.mxu0 %v2558
        %2580 = vmatpush.bf16.msra.mxu0 %v2557
        %2581 = vmatmul.bf16.gmra.mxu0 %v1291
        %v2582 = vpop.f32.mrf.mxu0
        %v2583 = vadd.f32 0.0, %v2582
        %v2584 = vpop.f32.mrf.mxu0
        %v2585 = vadd.f32 0.0, %v2584
        %2586 = vmatmul.bf16.gmra.mxu0 %v1292
        %v2587 = vpop.f32.mrf.mxu0
        %v2588 = vadd.f32 0.0, %v2587
        %v2589 = vpop.f32.mrf.mxu0
        %v2590 = vadd.f32 0.0, %v2589
        %2591 = vmatmul.bf16.gmra.mxu0 %v1293
        %v2592 = vpop.f32.mrf.mxu0
        %v2593 = vadd.f32 0.0, %v2592
        %v2594 = vpop.f32.mrf.mxu0
        %v2595 = vadd.f32 0.0, %v2594
        %2596 = vmatmul.bf16.gmra.mxu0 %v1294
        %v2597 = vpop.f32.mrf.mxu0
        %v2598 = vadd.f32 0.0, %v2597
        %v2599 = vpop.f32.mrf.mxu0
        %v2600 = vadd.f32 0.0, %v2599
        %2601 = vmatmul.bf16.gmra.mxu0 %v1295
        %v2602 = vpop.f32.mrf.mxu0
        %v2603 = vadd.f32 0.0, %v2602
        %v2604 = vpop.f32.mrf.mxu0
        %v2605 = vadd.f32 0.0, %v2604
        %2606 = vmatmul.bf16.gmra.mxu0 %v1296
        %v2607 = vpop.f32.mrf.mxu0
        %v2608 = vadd.f32 0.0, %v2607
        %v2609 = vpop.f32.mrf.mxu0
        %v2610 = vadd.f32 0.0, %v2609
        %2611 = vmatmul.bf16.gmra.mxu0 %v1297
        %v2612 = vpop.f32.mrf.mxu0
        %v2613 = vadd.f32 0.0, %v2612
        %v2614 = vpop.f32.mrf.mxu0
        %v2615 = vadd.f32 0.0, %v2614
        %2616 = vmatmul.bf16.gmra.mxu0 %v1298
        %v2617 = vpop.f32.mrf.mxu0
        %v2618 = vadd.f32 0.0, %v2617
        %v2619 = vpop.f32.mrf.mxu0
        %v2620 = vadd.f32 0.0, %v2619
        %2621 = vmatmul.bf16.gmra.mxu0 %v1299
        %v2622 = vpop.f32.mrf.mxu0
        %v2623 = vadd.f32 0.0, %v2622
        %v2624 = vpop.f32.mrf.mxu0
        %v2625 = vadd.f32 0.0, %v2624
        %2626 = vmatmul.bf16.gmra.mxu0 %v1300
        %v2627 = vpop.f32.mrf.mxu0
        %v2628 = vadd.f32 0.0, %v2627
        %v2629 = vpop.f32.mrf.mxu0
        %v2630 = vadd.f32 0.0, %v2629
        %2631 = vmatmul.bf16.gmra.mxu0 %v1301
        %v2632 = vpop.f32.mrf.mxu0
        %v2633 = vadd.f32 0.0, %v2632
        %v2634 = vpop.f32.mrf.mxu0
        %v2635 = vadd.f32 0.0, %v2634
        %2636 = vmatmul.bf16.gmra.mxu0 %v1302
        %v2637 = vpop.f32.mrf.mxu0
        %v2638 = vadd.f32 0.0, %v2637
        %v2639 = vpop.f32.mrf.mxu0
        %v2640 = vadd.f32 0.0, %v2639
        %2641 = vmatmul.bf16.gmra.mxu0 %v1303
        %v2642 = vpop.f32.mrf.mxu0
        %v2643 = vadd.f32 0.0, %v2642
        %v2644 = vpop.f32.mrf.mxu0
        %v2645 = vadd.f32 0.0, %v2644
        %2646 = vmatmul.bf16.gmra.mxu0 %v1304
        %v2647 = vpop.f32.mrf.mxu0
        %v2648 = vadd.f32 0.0, %v2647
        %v2649 = vpop.f32.mrf.mxu0
        %v2650 = vadd.f32 0.0, %v2649
        %2651 = vmatmul.bf16.gmra.mxu0 %v1921
        %v2652 = vpop.f32.mrf.mxu0
        %v2653 = vadd.f32 0.0, %v2652
        %v2654 = vpop.f32.mrf.mxu0
        %v2655 = vadd.f32 0.0, %v2654
        %2656 = vmatmul.bf16.gmra.mxu0 %v2523
        %v2657 = vpop.f32.mrf.mxu0
        %v2658 = vadd.f32 0.0, %v2657
        %v2659 = vpop.f32.mrf.mxu0
        %v2660 = vadd.f32 0.0, %v2659
        %2661 = vdwg.mxu0
        %v2662 = vadd.f32 %v2464, %v2583
        %v2663 = vadd.f32 %v2465, %v2585
        %v2664 = vadd.f32 %v2466, %v2588
        %v2665 = vadd.f32 %v2467, %v2590
        %v2666 = vadd.f32 %v2468, %v2593
        %v2667 = vadd.f32 %v2469, %v2595
        %v2668 = vadd.f32 %v2470, %v2598
        %v2669 = vadd.f32 %v2471, %v2600
        %v2670 = vadd.f32 %v2472, %v2603
        %v2671 = vadd.f32 %v2473, %v2605
        %v2672 = vadd.f32 %v2474, %v2608
        %v2673 = vadd.f32 %v2475, %v2610
        %v2674 = vadd.f32 %v2476, %v2613
        %v2675 = vadd.f32 %v2477, %v2615
        %v2676 = vadd.f32 %v2478, %v2618
        %v2677 = vadd.f32 %v2479, %v2620
        %v2678 = vadd.f32 %v2480, %v2623
        %v2679 = vadd.f32 %v2481, %v2625
        %v2680 = vadd.f32 %v2482, %v2628
        %v2681 = vadd.f32 %v2483, %v2630
        %v2682 = vadd.f32 %v2484, %v2633
        %v2683 = vadd.f32 %v2485, %v2635
        %v2684 = vadd.f32 %v2486, %v2638
        %v2685 = vadd.f32 %v2487, %v2640
        %v2686 = vadd.f32 %v2488, %v2643
        %v2687 = vadd.f32 %v2489, %v2645
        %v2688 = vadd.f32 %v2490, %v2648
        %v2689 = vadd.f32 %v2491, %v2650
        %v2690 = vadd.f32 %v2492, %v2653
        %v2691 = vadd.f32 %v2493, %v2655
        %v2692 = vadd.f32 %v2494, %v2658
        %v2693 = vadd.f32 %v2495, %v2660
        %v2694 = vld [vmem:[%s2] sm:$0x1]
        %v2696 = vperm.slane %v2694, 0
        %v2698 = vadd.f32 %v2662, %v2696
        %v2699 = vadd.f32 %v2663, %v2696
        %v2700 = vadd.f32 %v2664, %v2696
        %v2701 = vadd.f32 %v2665, %v2696
        %v2702 = vadd.f32 %v2666, %v2696
        %v2703 = vadd.f32 %v2667, %v2696
        %v2704 = vadd.f32 %v2668, %v2696
        %v2705 = vadd.f32 %v2669, %v2696
        %v2706 = vadd.f32 %v2670, %v2696
        %v2707 = vadd.f32 %v2671, %v2696
        %v2708 = vadd.f32 %v2672, %v2696
        %v2709 = vadd.f32 %v2673, %v2696
        %v2710 = vadd.f32 %v2674, %v2696
        %v2711 = vadd.f32 %v2675, %v2696
        %v2712 = vadd.f32 %v2676, %v2696
        %v2713 = vadd.f32 %v2677, %v2696
        %v2714 = vadd.f32 %v2678, %v2696
        %v2715 = vadd.f32 %v2679, %v2696
        %v2716 = vadd.f32 %v2680, %v2696
        %v2717 = vadd.f32 %v2681, %v2696
        %v2718 = vadd.f32 %v2682, %v2696
        %v2719 = vadd.f32 %v2683, %v2696
        %v2720 = vadd.f32 %v2684, %v2696
        %v2721 = vadd.f32 %v2685, %v2696
        %v2722 = vadd.f32 %v2686, %v2696
        %v2723 = vadd.f32 %v2687, %v2696
        %v2724 = vadd.f32 %v2688, %v2696
        %v2725 = vadd.f32 %v2689, %v2696
        %v2726 = vadd.f32 %v2690, %v2696
        %v2727 = vadd.f32 %v2691, %v2696
        %v2728 = vadd.f32 %v2692, %v2696
        %v2729 = vadd.f32 %v2693, %v2696
        %v2730 = vmax.f32 %v2698, 0.0
        %v2731 = vmax.f32 %v2699, 0.0
        %v2732 = vmax.f32 %v2700, 0.0
        %v2733 = vmax.f32 %v2701, 0.0
        %v2734 = vmax.f32 %v2702, 0.0
        %v2735 = vmax.f32 %v2703, 0.0
        %v2736 = vmax.f32 %v2704, 0.0
        %v2737 = vmax.f32 %v2705, 0.0
        %v2738 = vmax.f32 %v2706, 0.0
        %v2739 = vmax.f32 %v2707, 0.0
        %v2740 = vmax.f32 %v2708, 0.0
        %v2741 = vmax.f32 %v2709, 0.0
        %v2742 = vmax.f32 %v2710, 0.0
        %v2743 = vmax.f32 %v2711, 0.0
        %v2744 = vmax.f32 %v2712, 0.0
        %v2745 = vmax.f32 %v2713, 0.0
        %v2746 = vmax.f32 %v2714, 0.0
        %v2747 = vmax.f32 %v2715, 0.0
        %v2748 = vmax.f32 %v2716, 0.0
        %v2749 = vmax.f32 %v2717, 0.0
        %v2750 = vmax.f32 %v2718, 0.0
        %v2751 = vmax.f32 %v2719, 0.0
        %v2752 = vmax.f32 %v2720, 0.0
        %v2753 = vmax.f32 %v2721, 0.0
        %v2754 = vmax.f32 %v2722, 0.0
        %v2755 = vmax.f32 %v2723, 0.0
        %v2756 = vmax.f32 %v2724, 0.0
        %v2757 = vmax.f32 %v2725, 0.0
        %v2758 = vmax.f32 %v2726, 0.0
        %v2759 = vmax.f32 %v2727, 0.0
        %v2760 = vmax.f32 %v2728, 0.0
        %v2761 = vmax.f32 %v2729, 0.0
        %v2762 = vpack.c.bf16 %v2730, %v2730
        %v2763 = vpack.c.bf16 %v2731, %v2731
        %v2764 = vpack.c.bf16 %v2732, %v2732
        %v2765 = vpack.c.bf16 %v2733, %v2733
        %v2766 = vpack.c.bf16 %v2734, %v2734
        %v2767 = vpack.c.bf16 %v2735, %v2735
        %v2768 = vpack.c.bf16 %v2736, %v2736
        %v2769 = vpack.c.bf16 %v2737, %v2737
        %v2770 = vpack.c.bf16 %v2738, %v2738
        %v2771 = vpack.c.bf16 %v2739, %v2739
        %v2772 = vpack.c.bf16 %v2740, %v2740
        %v2773 = vpack.c.bf16 %v2741, %v2741
        %v2774 = vpack.c.bf16 %v2742, %v2742
        %v2775 = vpack.c.bf16 %v2743, %v2743
        %v2776 = vpack.c.bf16 %v2744, %v2744
        %v2777 = vpack.c.bf16 %v2745, %v2745
        %v2778 = vpack.c.bf16 %v2746, %v2746
        %v2779 = vpack.c.bf16 %v2747, %v2747
        %v2780 = vpack.c.bf16 %v2748, %v2748
        %v2781 = vpack.c.bf16 %v2749, %v2749
        %v2782 = vpack.c.bf16 %v2750, %v2750
        %v2783 = vpack.c.bf16 %v2751, %v2751
        %v2784 = vpack.c.bf16 %v2752, %v2752
        %v2785 = vpack.c.bf16 %v2753, %v2753
        %v2786 = vpack.c.bf16 %v2754, %v2754
        %v2787 = vpack.c.bf16 %v2755, %v2755
        %v2788 = vpack.c.bf16 %v2756, %v2756
        %v2789 = vpack.c.bf16 %v2757, %v2757
        %v2790 = vpack.c.bf16 %v2758, %v2758
        %v2791 = vpack.c.bf16 %v2759, %v2759
        %v2792 = vpack.c.bf16 %v2760, %v2760
        %v2793 = vpack.c.bf16 %v2761, %v2761
        %2794 = vst [vmem:[%s163] sm:$0xf] %v2762
        %2795 = vst [vmem:[%s163 + $0x4] sm:$0xf] %v2763
        %2796 = vst [vmem:[%s163 + $0x8] sm:$0xf] %v2764
        %2797 = vst [vmem:[%s163 + $0xc] sm:$0xf] %v2765
        %2798 = vst [vmem:[%s163 + $0x10] sm:$0xf] %v2766
        %2799 = vst [vmem:[%s163 + $0x14] sm:$0xf] %v2767
        %2800 = vst [vmem:[%s163 + $0x18] sm:$0xf] %v2768
        %2801 = vst [vmem:[%s163 + $0x1c] sm:$0xf] %v2769
        %2802 = vst [vmem:[%s163 + $0x20] sm:$0xf] %v2770
        %2803 = vst [vmem:[%s163 + $0x24] sm:$0xf] %v2771
        %2804 = vst [vmem:[%s163 + $0x28] sm:$0xf] %v2772
        %2805 = vst [vmem:[%s163 + $0x2c] sm:$0xf] %v2773
        %2806 = vst [vmem:[%s163 + $0x30] sm:$0xf] %v2774
        %2807 = vst [vmem:[%s163 + $0x34] sm:$0xf] %v2775
        %2808 = vst [vmem:[%s163 + $0x38] sm:$0xf] %v2776
        %2809 = vst [vmem:[%s163 + $0x3c] sm:$0xf] %v2777
        %2810 = vst [vmem:[%s163 + $0x40] sm:$0xf] %v2778
        %2811 = vst [vmem:[%s163 + $0x44] sm:$0xf] %v2779
        %2812 = vst [vmem:[%s163 + $0x48] sm:$0xf] %v2780
        %2813 = vst [vmem:[%s163 + $0x4c] sm:$0xf] %v2781
        %2814 = vst [vmem:[%s163 + $0x50] sm:$0xf] %v2782
        %2815 = vst [vmem:[%s163 + $0x54] sm:$0xf] %v2783
        %2816 = vst [vmem:[%s163 + $0x58] sm:$0xf] %v2784
        %2817 = vst [vmem:[%s163 + $0x5c] sm:$0xf] %v2785
        %2818 = vst [vmem:[%s163 + $0x60] sm:$0xf] %v2786
        %2819 = vst [vmem:[%s163 + $0x64] sm:$0xf] %v2787
        %2820 = vst [vmem:[%s163 + $0x68] sm:$0xf] %v2788
        %2821 = vst [vmem:[%s163 + $0x6c] sm:$0xf] %v2789
        %2822 = vst [vmem:[%s163 + $0x70] sm:$0xf] %v2790
        %2823 = vst [vmem:[%s163 + $0x74] sm:$0xf] %v2791
        %2824 = vst [vmem:[%s163 + $0x78] sm:$0xf] %v2792
        %2825 = vst [vmem:[%s163 + $0x7c] sm:$0xf] %v2793
        %s2826 = sand.u32 %s93, 1
        %s2827 = scalar_lea.sflag [#allocation3], %s2826
        %s2828 = sand.u32 %s93, 1
        %s2829 = smul.addr %s2828, 128
        %s2830 = scalar_lea.vmem [#allocation2], %s2829
        // Predicated region
        $region33: #{tpu_custom_call.1} parent=31 // pred_check
          %p2831 = pneg %p103
        $region34: #{tpu_custom_call.1} parent=31 // pred_check_branch
          %2833 = sbr.rel (%p2831) target = $region36
        $region35: #{tpu_custom_call.1} parent=31 // pred_region
          %2835 = vsyncadd %s2827, 0
          %s2836 = smul.addr %s17, 32
          %s2837 = smul.addr %s2836, 4
          %s2838 = scalar_lea.hbm %s3, %s2837
          %s2839 = sshll.u32 %s2830, 4
          %s2840 = int_to_ptr.vmem [resolvable:$true] %s2839
          %s2841 = sshll.u32 %s2838, 4
          %s2842 = int_to_ptr.hbm [resolvable:$true] %s2841
          %2847 = dma.vmem_to_hbm [thread:$0]  %s2840, 2048, %s2842, %s2827, 64, 64, 4
        $region36: #{tpu_custom_call.1} parent=31 // pred_fallthru
          _
      $region32: #{tpu_custom_call.1} parent=5 // pred_fallthru
        _
      %p2848 = scmp.le.s32.totalorder 2, %s12
      // Predicated region
      $region37: #{tpu_custom_call.1} parent=5 // pred_check
        %p2849 = pneg %p2848
      $region38: #{tpu_custom_call.1} parent=5 // pred_check_branch
        %2851 = sbr.rel (%p2849) target = $region40
      $region39: #{tpu_custom_call.1} parent=5 // pred_region
        %s2852 = ssub.s32 %s12, 2
        // Predicated region
        $region41: #{tpu_custom_call.1} parent=39 // pred_check
          %p2853 = pneg %p109
        $region42: #{tpu_custom_call.1} parent=39 // pred_check_branch
          %2855 = sbr.rel (%p2853) target = $region44
        $region43: #{tpu_custom_call.1} parent=39 // pred_region
          %s2856 = sand.u32 %s94, 1
          %s2857 = scalar_lea.sflag [#allocation3], %s2856
          %s2858 = sand.u32 %s94, 1
          %s2859 = smul.addr %s2858, 128
          %s2860 = scalar_lea.vmem [#allocation2], %s2859
          %2862 = dma.done %s2857, 2048
        $region44: #{tpu_custom_call.1} parent=39 // pred_fallthru
          _
      $region40: #{tpu_custom_call.1} parent=5 // pred_fallthru
        _
    $region6: #{tpu_custom_call.1} parent=1 // loop_footer
      %s16 = sadd.s32 1, %s12
    $region7: #{tpu_custom_call.1} parent=1 // loop_footer_branch
      %11 = sbr.rel target = $region3
    $region8: #{tpu_custom_call.1} parent=1 // loop_exit
      _
    %2863 = vsyncpa [#allocation3], 1
    %s2864 = scalar_lea.sflag [#allocation3], 1
    %2865 = vsyncpa %s2864, 1

</llo_original>
